<compile_context>
chip_gen: v6e
topology: v6e:2x2x1
jax: 0.10.0
libtpu: 0.0.40
codegen_flags: <defaults>
</compile_context>

<pallas_src>
import functools

import jax
import jax.numpy as jnp
from jax.experimental import pallas as pl
from jax.experimental.pallas import tpu as pltpu


# ----------------------------- kernel body ----------------------------------


def _shifted_softplus_kernel(x_ref, o_ref, *, beta: float, threshold: float):
    # Upcast to f32 inside vregs only (HBM traffic stays in the caller's dtype;
    # on v5e the VPU/EUP have no bf16 path so f32 compute is the portable choice).
    x = x_ref[...]
    z = x.astype(jnp.float32) - 1.0          # the "shifted" part
    bz = beta * z
    # PyTorch softplus threshold semantics: linear when beta*z > threshold,
    # numerically-stable log1p(exp(.)) otherwise (clamp avoids overflow in exp).
    safe_bz = jnp.minimum(bz, threshold)
    soft = jnp.log1p(jnp.exp(safe_bz)) * (1.0 / beta)
    out = jnp.where(bz > threshold, z, soft)
    o_ref[...] = out.astype(o_ref.dtype)


def _shifted_softplus_jnp(x, beta, threshold):
    """Reference / fast-path / ragged-tail implementation (same math as kernel)."""
    z = x.astype(jnp.float32) - 1.0
    bz = beta * z
    soft = jnp.log1p(jnp.exp(jnp.minimum(bz, threshold))) * (1.0 / beta)
    return jnp.where(bz > threshold, z, soft).astype(x.dtype)


# --------------------------- chip-aware config -------------------------------


@functools.lru_cache(maxsize=1)
def _chip_config():
    """(num_tensorcores_per_chip, target_tile_bytes, vmem_limit_bytes_or_None)."""
    kind = ""
    try:
        kind = jax.devices()[0].device_kind.lower()
    except Exception:
        pass
    if "v7" in kind:
        # v7x: 2 TCs/chip, 64 MiB VMEM/TC, 3.2 TB/s HBM. Bigger blocks amortize the
        # ~0.35 us/step overhead; 8 MiB blocks double-buffered (in+out) = 32 MiB,
        # which needs an explicit vmem limit above the 32 MiB scoped default.
        return 2, 8 * 1024 * 1024, 48 * 1024 * 1024
    # v5e / v6e: single TC, ~2 MiB tiles already reach ~85% of HBM roofline and fit
    # every scoped-VMEM default without extra flags.
    return 1, 2 * 1024 * 1024, None


def _pick_cols(total, sublane_mult):
    """Largest lane-dense width that still leaves full sublane groups of rows."""
    candidates = (8192, 4096, 2048, 1024, 512, 256, 128)
    # Preferred: a whole number of fully-packed sublane groups (rows % mult == 0).
    for c in candidates:
        if total % c == 0:
            rows = total // c
            if rows >= sublane_mult and rows % sublane_mult == 0:
                return c
    # Next best: at least 8 rows so 8x128 tiles are fully used.
    for c in candidates:
        if total % c == 0 and (total // c) >= 8:
            return c
    # Last resort: any width that divides (tiny inputs; small fast path usually
    # catches these before we get here).
    for c in candidates:
        if total % c == 0:
            return c
    return None


# ------------------------------ pallas path ----------------------------------


def _pallas_flat(x_flat, beta, threshold):
    """Run the kernel on a 1-D array whose length is a multiple of 128."""
    total = x_flat.size
    dtype = x_flat.dtype
    itemsize = jnp.dtype(dtype).itemsize
    # Sublane packing: 8 rows/vreg for 32-bit, 16 for 16-bit, 32 for 8-bit dtypes.
    sublane_mult = max(8, 32 // itemsize)

    num_tc, target_tile_bytes, vmem_limit = _chip_config()

    cols = _pick_cols(total, sublane_mult)
    rows = total // cols
    x2d = jnp.reshape(x_flat, (rows, cols))

    # Tile sizing: ~target_tile_bytes per block, rows rounded to the packing mult.
    block_rows = max(1, min(rows, target_tile_bytes // max(cols * itemsize, 1)))
    if rows >= sublane_mult:
        block_rows = max(sublane_mult, (block_rows // sublane_mult) * sublane_mult)
        if num_tc >= 2:
            # Keep >= 2 grid steps per TensorCore so the BlockSpec pipeline can
            # overlap DMA with compute on each core -- but only if each step still
            # moves >= ~1 MiB (otherwise step overhead outweighs the overlap).
            cap = (rows // (2 * num_tc) // sublane_mult) * sublane_mult
            if cap >= sublane_mult and cap * cols * itemsize >= 1 * 1024 * 1024:
                block_rows = min(block_rows, cap)
    else:
        # Tiny row count: block must equal the (short) full row dim.
        block_rows = rows

    grid = (pl.cdiv(rows, block_rows),)

    kernel = functools.partial(
        _shifted_softplus_kernel, beta=float(beta), threshold=float(threshold)
    )

    cp_kwargs = dict(dimension_semantics=("parallel",))
    if vmem_limit is not None:
        cp_kwargs["vmem_limit_bytes"] = int(vmem_limit)

    out2d = pl.pallas_call(
        kernel,
        out_shape=jax.ShapeDtypeStruct((rows, cols), dtype),
        grid_spec=pltpu.PrefetchScalarGridSpec(
            num_scalar_prefetch=0,
            grid=grid,
            in_specs=[pl.BlockSpec((block_rows, cols), lambda i: (i, 0))],
            out_specs=pl.BlockSpec((block_rows, cols), lambda i: (i, 0)),
        ),
        compiler_params=pltpu.CompilerParams(**cp_kwargs),
    )(x2d)
    return jnp.reshape(out2d, (-1,))


# ------------------------------ public wrapper --------------------------------


def shifted_softplus(x: jax.Array, beta: float = 1.0, threshold: float = 20.0) -> jax.Array:
    orig_shape = x.shape
    total = x.size
    if total == 0:
        return x
    itemsize = jnp.dtype(x.dtype).itemsize

    # Small-array fast path: pallas_call launch + per-step overhead dominates below
    # ~64 KiB; XLA's fused elementwise is already at roofline there.
    if total * itemsize < 64 * 1024 or total < 128:
        return _shifted_softplus_jnp(x, beta, threshold)

    x_flat = jnp.reshape(x, (-1,))
    main = (total // 128) * 128
    if main == total:
        out_flat = _pallas_flat(x_flat, beta, threshold)
    else:
        # Ragged size: Pallas on the 128-aligned prefix; the <128-element tail is
        # trivial in plain jnp (avoids full-array pad + slice HBM passes).
        out_head = _pallas_flat(x_flat[:main], beta, threshold)
        out_tail = _shifted_softplus_jnp(x_flat[main:], beta, threshold)
        out_flat = jnp.concatenate([out_head, out_tail])

    return jnp.reshape(out_flat, orig_shape)


# ---------------------------------- demo --------------------------------------


if __name__ == "__main__":
    key = jax.random.PRNGKey(0)
    k1, k2, k3, k4 = jax.random.split(key, 4)

    ref = _shifted_softplus_jnp

    # 1) Small activation block (takes the jnp fast path).
    x1 = jax.random.normal(k1, (2, 4, 16, 16), dtype=jnp.float32) * 10.0
    y1 = jax.block_until_ready(shifted_softplus(x1, beta=1.0, threshold=20.0))
    assert y1.shape == x1.shape and y1.dtype == x1.dtype
    assert jnp.allclose(y1, ref(x1, 1.0, 20.0), atol=1e-5, rtol=1e-5)

    # 2) Medium f32 slab, size divisible by 128 (Pallas path, full-width tiles).
    x2 = jax.random.normal(k2, (256, 384), dtype=jnp.float32) * 10.0
    y2 = jax.block_until_ready(shifted_softplus(x2, beta=1.0, threshold=20.0))
    assert y2.shape == x2.shape and y2.dtype == x2.dtype
    assert jnp.allclose(y2, ref(x2, 1.0, 20.0), atol=1e-5, rtol=1e-5)

    # 3) Ragged size (not a multiple of 128): Pallas prefix + jnp tail.
    x3 = jax.random.normal(k3, (257, 129), dtype=jnp.float32) * 10.0
    y3 = jax.block_until_ready(shifted_softplus(x3, beta=1.0, threshold=20.0))
    assert y3.shape == x3.shape and y3.dtype == x3.dtype
    assert jnp.allclose(y3, ref(x3, 1.0, 20.0), atol=1e-5, rtol=1e-5)

    # 4) bf16 input: exercises the 16-row sublane-packing multiple.
    x4 = jax.random.normal(k4, (128, 512), dtype=jnp.bfloat16) * 10.0
    y4 = jax.block_until_ready(shifted_softplus(x4, beta=1.0, threshold=20.0))
    assert y4.shape == x4.shape and y4.dtype == jnp.bfloat16
    assert jnp.allclose(
        y4.astype(jnp.float32), ref(x4, 1.0, 20.0).astype(jnp.float32),
        atol=2e-2, rtol=2e-2)

    print("KERNEL_OK")
</pallas_src>

<mosaic_0001>
module attributes {stable_mosaic.version = 11 : i64} {
  func.func @_shifted_softplus_kernel(%arg0: i32, %arg1: memref<24x4096xf32, #tpu.memory_space<vmem>>, %arg2: memref<24x4096xf32, #tpu.memory_space<vmem>>) attributes {dimension_semantics = [#tpu.dimension_semantics<parallel>], iteration_bounds = array<i64: 1>, scalar_prefetch = 0 : i64, scratch_operands = 0 : i64, tpu.core_type = #tpu.core_type<tc>, window_params = [{transform_indices = @transform_0, window_bounds = array<i64: 24, 4096>}, {transform_indices = @transform_1, window_bounds = array<i64: 24, 4096>}]} {
    %c0 = arith.constant 0 : index
    %c0_0 = arith.constant 0 : index
    %0 = vector.load %arg1[%c0, %c0_0] : memref<24x4096xf32, #tpu.memory_space<vmem>>, vector<24x4096xf32>
    %cst = arith.constant 1.000000e+00 : f32
    %1 = vector.broadcast %cst : f32 to vector<24x4096xf32>
    %2 = arith.subf %0, %1 : vector<24x4096xf32>
    %cst_1 = arith.constant 1.000000e+00 : f32
    %3 = vector.broadcast %cst_1 : f32 to vector<24x4096xf32>
    %4 = arith.mulf %3, %2 : vector<24x4096xf32>
    %cst_2 = arith.constant 2.000000e+01 : f32
    %5 = vector.broadcast %cst_2 : f32 to vector<24x4096xf32>
    %6 = arith.minimumf %4, %5 : vector<24x4096xf32>
    %7 = math.exp %6 : vector<24x4096xf32>
    %8 = math.log1p %7 : vector<24x4096xf32>
    %cst_3 = arith.constant 1.000000e+00 : f32
    %9 = vector.broadcast %cst_3 : f32 to vector<24x4096xf32>
    %10 = arith.mulf %8, %9 : vector<24x4096xf32>
    %cst_4 = arith.constant 2.000000e+01 : f32
    %11 = vector.broadcast %cst_4 : f32 to vector<24x4096xf32>
    %12 = arith.cmpf ogt, %4, %11 : vector<24x4096xf32>
    %13 = arith.select %12, %2, %10 : vector<24x4096xi1>, vector<24x4096xf32>
    %c0_5 = arith.constant 0 : index
    %c0_6 = arith.constant 0 : index
    %14 = vector.load %arg2[%c0_5, %c0_6] : memref<24x4096xf32, #tpu.memory_space<vmem>>, vector<24x4096xf32>
    tpu.vector_store %arg2[%c0_5, %c0_6], %13 {strides = array<i32>} : memref<24x4096xf32, #tpu.memory_space<vmem>>, vector<24x4096xf32>,
    return
  }
  func.func @transform_0(%arg0: i32) -> (i32, i32) {
    %c0_i32 = arith.constant 0 : i32
    %c0_i32_0 = arith.constant 0 : i32
    return %arg0, %c0_i32 : i32, i32
  }
  func.func @transform_1(%arg0: i32) -> (i32, i32) {
    %c0_i32 = arith.constant 0 : i32
    %c0_i32_0 = arith.constant 0 : i32
    return %arg0, %c0_i32 : i32, i32
  }
}

</mosaic_0001>

<llo_original>
// kernel: tpu_custom_call.1
$region0: #{tpu_custom_call.1}
  #allocation0 [shape = 'u32[]', space=smem, size = 0x4, offset = 0x4, fixed_abs, tag = 'smem constant byte address 0x4 - core index']
  #allocation1 [shape = 'u32[144,128]{1,0:T(1,128)}', space=vmem, size = 0x12000, scoped, tag = 'internal scratch']
  %s0 = inlined_call_operand.hbm [shape: f32[24,4096], index: 0, kind: input, shape index: {}]
  %s1 = inlined_call_operand.hbm [shape: f32[24,4096], index: 1, kind: output, shape index: {}]
  %s2 = sld [smem:[#allocation0]]
  $region18: #{tpu_custom_call.1} parent=0
    _
  %s4 = ssub.s32 1, %s2
  %s5 = scalar_select 0, %s4, %s2
  $region1: #{tpu_custom_call.1} parent=0
    #allocation2 [shape = 'u8[393216]{0}', space=vmem, size = 0x60000, scoped, tag = 'input window, operand 0, single buffered']
    #allocation3 [shape = 's32[1]{0}', space=sflag, size = 0x4, scoped, tag = 'scoped memory for tpu_custom_call.1']
    #allocation4 [shape = 's32[1]{0}', space=sflag, size = 0x4, scoped, tag = 'scoped memory for tpu_custom_call.1']
    #allocation5 [shape = 'u8[393216]{0}', space=vmem, size = 0x60000, scoped, tag = 'output window, operand 0, single buffered']
    %6 = vsyncpa [#allocation3], 0
    %7 = vsyncpa [#allocation4], 0
    // Predicated region
    $region2: #{tpu_custom_call.1} parent=1 // pred_check
      _
    $region3: #{tpu_custom_call.1} parent=1 // pred_check_branch
      %9 = sbr.rel (0) target = $region5
    $region4: #{tpu_custom_call.1} parent=1 // pred_region
      %s11 = ssub.s32 12288, 12288
      %12 = vsyncadd [#allocation3], %s11
      %s13 = sshll.u32 [#allocation2], 4
      %s14 = int_to_ptr.vmem [resolvable:$true] %s13
      %19 = dma.hbm_to_vmem [thread:$0]  %s0, 12288, %s14, [#allocation3], 4096, 4096, 256
    $region5: #{tpu_custom_call.1} parent=1 // pred_fallthru
      _
    // Predicated region
    $region6: #{tpu_custom_call.1} parent=1 // pred_check
      _
    $region7: #{tpu_custom_call.1} parent=1 // pred_check_branch
      %21 = sbr.rel (0) target = $region9
    $region8: #{tpu_custom_call.1} parent=1 // pred_region
      %22 = dma.done [#allocation3], 12288
    $region9: #{tpu_custom_call.1} parent=1 // pred_fallthru
      _
    %v23 = vld [vmem:[#allocation2] sm:$0xff]
    %v24 = vld [vmem:[#allocation2 + $0x8] sm:$0xff]
    %v25 = vld [vmem:[#allocation2 + $0x10] sm:$0xff]
    %v26 = vld [vmem:[#allocation2 + $0x18] sm:$0xff]
    %v27 = vld [vmem:[#allocation2 + $0x20] sm:$0xff]
    %v28 = vld [vmem:[#allocation2 + $0x28] sm:$0xff]
    %v29 = vld [vmem:[#allocation2 + $0x30] sm:$0xff]
    %v30 = vld [vmem:[#allocation2 + $0x38] sm:$0xff]
    %v31 = vld [vmem:[#allocation2 + $0x40] sm:$0xff]
    %v32 = vld [vmem:[#allocation2 + $0x48] sm:$0xff]
    %v33 = vld [vmem:[#allocation2 + $0x50] sm:$0xff]
    %v34 = vld [vmem:[#allocation2 + $0x58] sm:$0xff]
    %v35 = vld [vmem:[#allocation2 + $0x60] sm:$0xff]
    %v36 = vld [vmem:[#allocation2 + $0x68] sm:$0xff]
    %v37 = vld [vmem:[#allocation2 + $0x70] sm:$0xff]
    %v38 = vld [vmem:[#allocation2 + $0x78] sm:$0xff]
    %v39 = vld [vmem:[#allocation2 + $0x80] sm:$0xff]
    %v40 = vld [vmem:[#allocation2 + $0x88] sm:$0xff]
    %v41 = vld [vmem:[#allocation2 + $0x90] sm:$0xff]
    %v42 = vld [vmem:[#allocation2 + $0x98] sm:$0xff]
    %v43 = vld [vmem:[#allocation2 + $0xa0] sm:$0xff]
    %v44 = vld [vmem:[#allocation2 + $0xa8] sm:$0xff]
    %v45 = vld [vmem:[#allocation2 + $0xb0] sm:$0xff]
    %v46 = vld [vmem:[#allocation2 + $0xb8] sm:$0xff]
    %v47 = vld [vmem:[#allocation2 + $0xc0] sm:$0xff]
    %v48 = vld [vmem:[#allocation2 + $0xc8] sm:$0xff]
    %v49 = vld [vmem:[#allocation2 + $0xd0] sm:$0xff]
    %v50 = vld [vmem:[#allocation2 + $0xd8] sm:$0xff]
    %v51 = vld [vmem:[#allocation2 + $0xe0] sm:$0xff]
    %v52 = vld [vmem:[#allocation2 + $0xe8] sm:$0xff]
    %v53 = vld [vmem:[#allocation2 + $0xf0] sm:$0xff]
    %v54 = vld [vmem:[#allocation2 + $0xf8] sm:$0xff]
    %v55 = vld [vmem:[#allocation2 + $0x100] sm:$0xff]
    %v56 = vld [vmem:[#allocation2 + $0x108] sm:$0xff]
    %v57 = vld [vmem:[#allocation2 + $0x110] sm:$0xff]
    %v58 = vld [vmem:[#allocation2 + $0x118] sm:$0xff]
    %v59 = vld [vmem:[#allocation2 + $0x120] sm:$0xff]
    %v60 = vld [vmem:[#allocation2 + $0x128] sm:$0xff]
    %v61 = vld [vmem:[#allocation2 + $0x130] sm:$0xff]
    %v62 = vld [vmem:[#allocation2 + $0x138] sm:$0xff]
    %v63 = vld [vmem:[#allocation2 + $0x140] sm:$0xff]
    %v64 = vld [vmem:[#allocation2 + $0x148] sm:$0xff]
    %v65 = vld [vmem:[#allocation2 + $0x150] sm:$0xff]
    %v66 = vld [vmem:[#allocation2 + $0x158] sm:$0xff]
    %v67 = vld [vmem:[#allocation2 + $0x160] sm:$0xff]
    %v68 = vld [vmem:[#allocation2 + $0x168] sm:$0xff]
    %v69 = vld [vmem:[#allocation2 + $0x170] sm:$0xff]
    %v70 = vld [vmem:[#allocation2 + $0x178] sm:$0xff]
    %v71 = vld [vmem:[#allocation2 + $0x180] sm:$0xff]
    %v72 = vld [vmem:[#allocation2 + $0x188] sm:$0xff]
    %v73 = vld [vmem:[#allocation2 + $0x190] sm:$0xff]
    %v74 = vld [vmem:[#allocation2 + $0x198] sm:$0xff]
    %v75 = vld [vmem:[#allocation2 + $0x1a0] sm:$0xff]
    %v76 = vld [vmem:[#allocation2 + $0x1a8] sm:$0xff]
    %v77 = vld [vmem:[#allocation2 + $0x1b0] sm:$0xff]
    %v78 = vld [vmem:[#allocation2 + $0x1b8] sm:$0xff]
    %v79 = vld [vmem:[#allocation2 + $0x1c0] sm:$0xff]
    %v80 = vld [vmem:[#allocation2 + $0x1c8] sm:$0xff]
    %v81 = vld [vmem:[#allocation2 + $0x1d0] sm:$0xff]
    %v82 = vld [vmem:[#allocation2 + $0x1d8] sm:$0xff]
    %v83 = vld [vmem:[#allocation2 + $0x1e0] sm:$0xff]
    %v84 = vld [vmem:[#allocation2 + $0x1e8] sm:$0xff]
    %v85 = vld [vmem:[#allocation2 + $0x1f0] sm:$0xff]
    %v86 = vld [vmem:[#allocation2 + $0x1f8] sm:$0xff]
    %v87 = vld [vmem:[#allocation2 + $0x200] sm:$0xff]
    %v88 = vld [vmem:[#allocation2 + $0x208] sm:$0xff]
    %v89 = vld [vmem:[#allocation2 + $0x210] sm:$0xff]
    %v90 = vld [vmem:[#allocation2 + $0x218] sm:$0xff]
    %v91 = vld [vmem:[#allocation2 + $0x220] sm:$0xff]
    %v92 = vld [vmem:[#allocation2 + $0x228] sm:$0xff]
    %v93 = vld [vmem:[#allocation2 + $0x230] sm:$0xff]
    %v94 = vld [vmem:[#allocation2 + $0x238] sm:$0xff]
    %v95 = vld [vmem:[#allocation2 + $0x240] sm:$0xff]
    %v96 = vld [vmem:[#allocation2 + $0x248] sm:$0xff]
    %v97 = vld [vmem:[#allocation2 + $0x250] sm:$0xff]
    %v98 = vld [vmem:[#allocation2 + $0x258] sm:$0xff]
    %v99 = vld [vmem:[#allocation2 + $0x260] sm:$0xff]
    %v100 = vld [vmem:[#allocation2 + $0x268] sm:$0xff]
    %v101 = vld [vmem:[#allocation2 + $0x270] sm:$0xff]
    %v102 = vld [vmem:[#allocation2 + $0x278] sm:$0xff]
    %v103 = vld [vmem:[#allocation2 + $0x280] sm:$0xff]
    %v104 = vld [vmem:[#allocation2 + $0x288] sm:$0xff]
    %v105 = vld [vmem:[#allocation2 + $0x290] sm:$0xff]
    %v106 = vld [vmem:[#allocation2 + $0x298] sm:$0xff]
    %v107 = vld [vmem:[#allocation2 + $0x2a0] sm:$0xff]
    %v108 = vld [vmem:[#allocation2 + $0x2a8] sm:$0xff]
    %v109 = vld [vmem:[#allocation2 + $0x2b0] sm:$0xff]
    %v110 = vld [vmem:[#allocation2 + $0x2b8] sm:$0xff]
    %v111 = vld [vmem:[#allocation2 + $0x2c0] sm:$0xff]
    %v112 = vld [vmem:[#allocation2 + $0x2c8] sm:$0xff]
    %v113 = vld [vmem:[#allocation2 + $0x2d0] sm:$0xff]
    %v114 = vld [vmem:[#allocation2 + $0x2d8] sm:$0xff]
    %v115 = vld [vmem:[#allocation2 + $0x2e0] sm:$0xff]
    %v116 = vld [vmem:[#allocation2 + $0x2e8] sm:$0xff]
    %v117 = vld [vmem:[#allocation2 + $0x2f0] sm:$0xff]
    %v118 = vld [vmem:[#allocation2 + $0x2f8] sm:$0xff]
    %v119 = vsub.f32 %v23, 1.0
    %v120 = vsub.f32 %v24, 1.0
    %v121 = vsub.f32 %v25, 1.0
    %v122 = vsub.f32 %v26, 1.0
    %v123 = vsub.f32 %v27, 1.0
    %v124 = vsub.f32 %v28, 1.0
    %v125 = vsub.f32 %v29, 1.0
    %v126 = vsub.f32 %v30, 1.0
    %v127 = vsub.f32 %v31, 1.0
    %v128 = vsub.f32 %v32, 1.0
    %v129 = vsub.f32 %v33, 1.0
    %v130 = vsub.f32 %v34, 1.0
    %v131 = vsub.f32 %v35, 1.0
    %v132 = vsub.f32 %v36, 1.0
    %v133 = vsub.f32 %v37, 1.0
    %v134 = vsub.f32 %v38, 1.0
    %v135 = vsub.f32 %v39, 1.0
    %v136 = vsub.f32 %v40, 1.0
    %v137 = vsub.f32 %v41, 1.0
    %v138 = vsub.f32 %v42, 1.0
    %v139 = vsub.f32 %v43, 1.0
    %v140 = vsub.f32 %v44, 1.0
    %v141 = vsub.f32 %v45, 1.0
    %v142 = vsub.f32 %v46, 1.0
    %v143 = vsub.f32 %v47, 1.0
    %v144 = vsub.f32 %v48, 1.0
    %v145 = vsub.f32 %v49, 1.0
    %v146 = vsub.f32 %v50, 1.0
    %v147 = vsub.f32 %v51, 1.0
    %v148 = vsub.f32 %v52, 1.0
    %v149 = vsub.f32 %v53, 1.0
    %v150 = vsub.f32 %v54, 1.0
    %v151 = vsub.f32 %v55, 1.0
    %v152 = vsub.f32 %v56, 1.0
    %v153 = vsub.f32 %v57, 1.0
    %v154 = vsub.f32 %v58, 1.0
    %v155 = vsub.f32 %v59, 1.0
    %v156 = vsub.f32 %v60, 1.0
    %v157 = vsub.f32 %v61, 1.0
    %v158 = vsub.f32 %v62, 1.0
    %v159 = vsub.f32 %v63, 1.0
    %v160 = vsub.f32 %v64, 1.0
    %v161 = vsub.f32 %v65, 1.0
    %v162 = vsub.f32 %v66, 1.0
    %v163 = vsub.f32 %v67, 1.0
    %v164 = vsub.f32 %v68, 1.0
    %v165 = vsub.f32 %v69, 1.0
    %v166 = vsub.f32 %v70, 1.0
    %v167 = vsub.f32 %v71, 1.0
    %v168 = vsub.f32 %v72, 1.0
    %v169 = vsub.f32 %v73, 1.0
    %v170 = vsub.f32 %v74, 1.0
    %v171 = vsub.f32 %v75, 1.0
    %v172 = vsub.f32 %v76, 1.0
    %v173 = vsub.f32 %v77, 1.0
    %v174 = vsub.f32 %v78, 1.0
    %v175 = vsub.f32 %v79, 1.0
    %v176 = vsub.f32 %v80, 1.0
    %v177 = vsub.f32 %v81, 1.0
    %v178 = vsub.f32 %v82, 1.0
    %v179 = vsub.f32 %v83, 1.0
    %v180 = vsub.f32 %v84, 1.0
    %v181 = vsub.f32 %v85, 1.0
    %v182 = vsub.f32 %v86, 1.0
    %v183 = vsub.f32 %v87, 1.0
    %v184 = vsub.f32 %v88, 1.0
    %v185 = vsub.f32 %v89, 1.0
    %v186 = vsub.f32 %v90, 1.0
    %v187 = vsub.f32 %v91, 1.0
    %v188 = vsub.f32 %v92, 1.0
    %v189 = vsub.f32 %v93, 1.0
    %v190 = vsub.f32 %v94, 1.0
    %v191 = vsub.f32 %v95, 1.0
    %v192 = vsub.f32 %v96, 1.0
    %v193 = vsub.f32 %v97, 1.0
    %v194 = vsub.f32 %v98, 1.0
    %v195 = vsub.f32 %v99, 1.0
    %v196 = vsub.f32 %v100, 1.0
    %v197 = vsub.f32 %v101, 1.0
    %v198 = vsub.f32 %v102, 1.0
    %v199 = vsub.f32 %v103, 1.0
    %v200 = vsub.f32 %v104, 1.0
    %v201 = vsub.f32 %v105, 1.0
    %v202 = vsub.f32 %v106, 1.0
    %v203 = vsub.f32 %v107, 1.0
    %v204 = vsub.f32 %v108, 1.0
    %v205 = vsub.f32 %v109, 1.0
    %v206 = vsub.f32 %v110, 1.0
    %v207 = vsub.f32 %v111, 1.0
    %v208 = vsub.f32 %v112, 1.0
    %v209 = vsub.f32 %v113, 1.0
    %v210 = vsub.f32 %v114, 1.0
    %v211 = vsub.f32 %v115, 1.0
    %v212 = vsub.f32 %v116, 1.0
    %v213 = vsub.f32 %v117, 1.0
    %v214 = vsub.f32 %v118, 1.0
    %v215 = vmin.f32 %v119, 20.0
    %v216 = vmin.f32 %v120, 20.0
    %v217 = vmin.f32 %v121, 20.0
    %v218 = vmin.f32 %v122, 20.0
    %v219 = vmin.f32 %v123, 20.0
    %v220 = vmin.f32 %v124, 20.0
    %v221 = vmin.f32 %v125, 20.0
    %v222 = vmin.f32 %v126, 20.0
    %v223 = vmin.f32 %v127, 20.0
    %v224 = vmin.f32 %v128, 20.0
    %v225 = vmin.f32 %v129, 20.0
    %v226 = vmin.f32 %v130, 20.0
    %v227 = vmin.f32 %v131, 20.0
    %v228 = vmin.f32 %v132, 20.0
    %v229 = vmin.f32 %v133, 20.0
    %v230 = vmin.f32 %v134, 20.0
    %v231 = vmin.f32 %v135, 20.0
    %v232 = vmin.f32 %v136, 20.0
    %v233 = vmin.f32 %v137, 20.0
    %v234 = vmin.f32 %v138, 20.0
    %v235 = vmin.f32 %v139, 20.0
    %v236 = vmin.f32 %v140, 20.0
    %v237 = vmin.f32 %v141, 20.0
    %v238 = vmin.f32 %v142, 20.0
    %v239 = vmin.f32 %v143, 20.0
    %v240 = vmin.f32 %v144, 20.0
    %v241 = vmin.f32 %v145, 20.0
    %v242 = vmin.f32 %v146, 20.0
    %v243 = vmin.f32 %v147, 20.0
    %v244 = vmin.f32 %v148, 20.0
    %v245 = vmin.f32 %v149, 20.0
    %v246 = vmin.f32 %v150, 20.0
    %v247 = vmin.f32 %v151, 20.0
    %v248 = vmin.f32 %v152, 20.0
    %v249 = vmin.f32 %v153, 20.0
    %v250 = vmin.f32 %v154, 20.0
    %v251 = vmin.f32 %v155, 20.0
    %v252 = vmin.f32 %v156, 20.0
    %v253 = vmin.f32 %v157, 20.0
    %v254 = vmin.f32 %v158, 20.0
    %v255 = vmin.f32 %v159, 20.0
    %v256 = vmin.f32 %v160, 20.0
    %v257 = vmin.f32 %v161, 20.0
    %v258 = vmin.f32 %v162, 20.0
    %v259 = vmin.f32 %v163, 20.0
    %v260 = vmin.f32 %v164, 20.0
    %v261 = vmin.f32 %v165, 20.0
    %v262 = vmin.f32 %v166, 20.0
    %v263 = vmin.f32 %v167, 20.0
    %v264 = vmin.f32 %v168, 20.0
    %v265 = vmin.f32 %v169, 20.0
    %v266 = vmin.f32 %v170, 20.0
    %v267 = vmin.f32 %v171, 20.0
    %v268 = vmin.f32 %v172, 20.0
    %v269 = vmin.f32 %v173, 20.0
    %v270 = vmin.f32 %v174, 20.0
    %v271 = vmin.f32 %v175, 20.0
    %v272 = vmin.f32 %v176, 20.0
    %v273 = vmin.f32 %v177, 20.0
    %v274 = vmin.f32 %v178, 20.0
    %v275 = vmin.f32 %v179, 20.0
    %v276 = vmin.f32 %v180, 20.0
    %v277 = vmin.f32 %v181, 20.0
    %v278 = vmin.f32 %v182, 20.0
    %v279 = vmin.f32 %v183, 20.0
    %v280 = vmin.f32 %v184, 20.0
    %v281 = vmin.f32 %v185, 20.0
    %v282 = vmin.f32 %v186, 20.0
    %v283 = vmin.f32 %v187, 20.0
    %v284 = vmin.f32 %v188, 20.0
    %v285 = vmin.f32 %v189, 20.0
    %v286 = vmin.f32 %v190, 20.0
    %v287 = vmin.f32 %v191, 20.0
    %v288 = vmin.f32 %v192, 20.0
    %v289 = vmin.f32 %v193, 20.0
    %v290 = vmin.f32 %v194, 20.0
    %v291 = vmin.f32 %v195, 20.0
    %v292 = vmin.f32 %v196, 20.0
    %v293 = vmin.f32 %v197, 20.0
    %v294 = vmin.f32 %v198, 20.0
    %v295 = vmin.f32 %v199, 20.0
    %v296 = vmin.f32 %v200, 20.0
    %v297 = vmin.f32 %v201, 20.0
    %v298 = vmin.f32 %v202, 20.0
    %v299 = vmin.f32 %v203, 20.0
    %v300 = vmin.f32 %v204, 20.0
    %v301 = vmin.f32 %v205, 20.0
    %v302 = vmin.f32 %v206, 20.0
    %v303 = vmin.f32 %v207, 20.0
    %v304 = vmin.f32 %v208, 20.0
    %v305 = vmin.f32 %v209, 20.0
    %v306 = vmin.f32 %v210, 20.0
    %v307 = vmin.f32 %v211, 20.0
    %v308 = vmin.f32 %v212, 20.0
    %v309 = vmin.f32 %v213, 20.0
    %v310 = vmin.f32 %v214, 20.0
    %v311 = vmul.f32 %v215, 1.442695
    %v312 = vpow.pop %v311
    %v313 = vmul.f32 %v216, 1.442695
    %v314 = vpow.pop %v313
    %v315 = vmul.f32 %v217, 1.442695
    %v316 = vpow.pop %v315
    %v317 = vmul.f32 %v218, 1.442695
    %v318 = vpow.pop %v317
    %v319 = vmul.f32 %v219, 1.442695
    %v320 = vpow.pop %v319
    %v321 = vmul.f32 %v220, 1.442695
    %v322 = vpow.pop %v321
    %v323 = vmul.f32 %v221, 1.442695
    %v324 = vpow.pop %v323
    %v325 = vmul.f32 %v222, 1.442695
    %v326 = vpow.pop %v325
    %v327 = vmul.f32 %v223, 1.442695
    %v328 = vpow.pop %v327
    %v329 = vmul.f32 %v224, 1.442695
    %v330 = vpow.pop %v329
    %v331 = vmul.f32 %v225, 1.442695
    %v332 = vpow.pop %v331
    %v333 = vmul.f32 %v226, 1.442695
    %v334 = vpow.pop %v333
    %v335 = vmul.f32 %v227, 1.442695
    %v336 = vpow.pop %v335
    %v337 = vmul.f32 %v228, 1.442695
    %v338 = vpow.pop %v337
    %v339 = vmul.f32 %v229, 1.442695
    %v340 = vpow.pop %v339
    %v341 = vmul.f32 %v230, 1.442695
    %v342 = vpow.pop %v341
    %v343 = vmul.f32 %v231, 1.442695
    %v344 = vpow.pop %v343
    %v345 = vmul.f32 %v232, 1.442695
    %v346 = vpow.pop %v345
    %v347 = vmul.f32 %v233, 1.442695
    %v348 = vpow.pop %v347
    %v349 = vmul.f32 %v234, 1.442695
    %v350 = vpow.pop %v349
    %v351 = vmul.f32 %v235, 1.442695
    %v352 = vpow.pop %v351
    %v353 = vmul.f32 %v236, 1.442695
    %v354 = vpow.pop %v353
    %v355 = vmul.f32 %v237, 1.442695
    %v356 = vpow.pop %v355
    %v357 = vmul.f32 %v238, 1.442695
    %v358 = vpow.pop %v357
    %v359 = vmul.f32 %v239, 1.442695
    %v360 = vpow.pop %v359
    %v361 = vmul.f32 %v240, 1.442695
    %v362 = vpow.pop %v361
    %v363 = vmul.f32 %v241, 1.442695
    %v364 = vpow.pop %v363
    %v365 = vmul.f32 %v242, 1.442695
    %v366 = vpow.pop %v365
    %v367 = vmul.f32 %v243, 1.442695
    %v368 = vpow.pop %v367
    %v369 = vmul.f32 %v244, 1.442695
    %v370 = vpow.pop %v369
    %v371 = vmul.f32 %v245, 1.442695
    %v372 = vpow.pop %v371
    %v373 = vmul.f32 %v246, 1.442695
    %v374 = vpow.pop %v373
    %v375 = vmul.f32 %v247, 1.442695
    %v376 = vpow.pop %v375
    %v377 = vmul.f32 %v248, 1.442695
    %v378 = vpow.pop %v377
    %v379 = vmul.f32 %v249, 1.442695
    %v380 = vpow.pop %v379
    %v381 = vmul.f32 %v250, 1.442695
    %v382 = vpow.pop %v381
    %v383 = vmul.f32 %v251, 1.442695
    %v384 = vpow.pop %v383
    %v385 = vmul.f32 %v252, 1.442695
    %v386 = vpow.pop %v385
    %v387 = vmul.f32 %v253, 1.442695
    %v388 = vpow.pop %v387
    %v389 = vmul.f32 %v254, 1.442695
    %v390 = vpow.pop %v389
    %v391 = vmul.f32 %v255, 1.442695
    %v392 = vpow.pop %v391
    %v393 = vmul.f32 %v256, 1.442695
    %v394 = vpow.pop %v393
    %v395 = vmul.f32 %v257, 1.442695
    %v396 = vpow.pop %v395
    %v397 = vmul.f32 %v258, 1.442695
    %v398 = vpow.pop %v397
    %v399 = vmul.f32 %v259, 1.442695
    %v400 = vpow.pop %v399
    %v401 = vmul.f32 %v260, 1.442695
    %v402 = vpow.pop %v401
    %v403 = vmul.f32 %v261, 1.442695
    %v404 = vpow.pop %v403
    %v405 = vmul.f32 %v262, 1.442695
    %v406 = vpow.pop %v405
    %v407 = vmul.f32 %v263, 1.442695
    %v408 = vpow.pop %v407
    %v409 = vmul.f32 %v264, 1.442695
    %v410 = vpow.pop %v409
    %v411 = vmul.f32 %v265, 1.442695
    %v412 = vpow.pop %v411
    %v413 = vmul.f32 %v266, 1.442695
    %v414 = vpow.pop %v413
    %v415 = vmul.f32 %v267, 1.442695
    %v416 = vpow.pop %v415
    %v417 = vmul.f32 %v268, 1.442695
    %v418 = vpow.pop %v417
    %v419 = vmul.f32 %v269, 1.442695
    %v420 = vpow.pop %v419
    %v421 = vmul.f32 %v270, 1.442695
    %v422 = vpow.pop %v421
    %v423 = vmul.f32 %v271, 1.442695
    %v424 = vpow.pop %v423
    %v425 = vmul.f32 %v272, 1.442695
    %v426 = vpow.pop %v425
    %v427 = vmul.f32 %v273, 1.442695
    %v428 = vpow.pop %v427
    %v429 = vmul.f32 %v274, 1.442695
    %v430 = vpow.pop %v429
    %v431 = vmul.f32 %v275, 1.442695
    %v432 = vpow.pop %v431
    %v433 = vmul.f32 %v276, 1.442695
    %v434 = vpow.pop %v433
    %v435 = vmul.f32 %v277, 1.442695
    %v436 = vpow.pop %v435
    %v437 = vmul.f32 %v278, 1.442695
    %v438 = vpow.pop %v437
    %v439 = vmul.f32 %v279, 1.442695
    %v440 = vpow.pop %v439
    %v441 = vmul.f32 %v280, 1.442695
    %v442 = vpow.pop %v441
    %v443 = vmul.f32 %v281, 1.442695
    %v444 = vpow.pop %v443
    %v445 = vmul.f32 %v282, 1.442695
    %v446 = vpow.pop %v445
    %v447 = vmul.f32 %v283, 1.442695
    %v448 = vpow.pop %v447
    %v449 = vmul.f32 %v284, 1.442695
    %v450 = vpow.pop %v449
    %v451 = vmul.f32 %v285, 1.442695
    %v452 = vpow.pop %v451
    %v453 = vmul.f32 %v286, 1.442695
    %v454 = vpow.pop %v453
    %v455 = vmul.f32 %v287, 1.442695
    %v456 = vpow.pop %v455
    %v457 = vmul.f32 %v288, 1.442695
    %v458 = vpow.pop %v457
    %v459 = vmul.f32 %v289, 1.442695
    %v460 = vpow.pop %v459
    %v461 = vmul.f32 %v290, 1.442695
    %v462 = vpow.pop %v461
    %v463 = vmul.f32 %v291, 1.442695
    %v464 = vpow.pop %v463
    %v465 = vmul.f32 %v292, 1.442695
    %v466 = vpow.pop %v465
    %v467 = vmul.f32 %v293, 1.442695
    %v468 = vpow.pop %v467
    %v469 = vmul.f32 %v294, 1.442695
    %v470 = vpow.pop %v469
    %v471 = vmul.f32 %v295, 1.442695
    %v472 = vpow.pop %v471
    %v473 = vmul.f32 %v296, 1.442695
    %v474 = vpow.pop %v473
    %v475 = vmul.f32 %v297, 1.442695
    %v476 = vpow.pop %v475
    %v477 = vmul.f32 %v298, 1.442695
    %v478 = vpow.pop %v477
    %v479 = vmul.f32 %v299, 1.442695
    %v480 = vpow.pop %v479
    %v481 = vmul.f32 %v300, 1.442695
    %v482 = vpow.pop %v481
    %v483 = vmul.f32 %v301, 1.442695
    %v484 = vpow.pop %v483
    %v485 = vmul.f32 %v302, 1.442695
    %v486 = vpow.pop %v485
    %v487 = vmul.f32 %v303, 1.442695
    %v488 = vpow.pop %v487
    %v489 = vmul.f32 %v304, 1.442695
    %v490 = vpow.pop %v489
    %v491 = vmul.f32 %v305, 1.442695
    %v492 = vpow.pop %v491
    %v493 = vmul.f32 %v306, 1.442695
    %v494 = vpow.pop %v493
    %v495 = vmul.f32 %v307, 1.442695
    %v496 = vpow.pop %v495
    %v497 = vmul.f32 %v308, 1.442695
    %v498 = vpow.pop %v497
    %v499 = vmul.f32 %v309, 1.442695
    %v500 = vpow.pop %v499
    %v501 = vmul.f32 %v310, 1.442695
    %v502 = vpow.pop %v501
    %v503 = vadd.f32 %v312, 1.0
    %v504 = vlog2.pop %v503
    %v505 = vmul.f32 %v504, 0.6931472
    %v506 = vmul.f32 -0.5, %v312
    %v507 = vadd.f32 %v506, 1.0
    %v508 = vmul.f32 %v507, %v312
    %v509 = vand.u32 2147483647, %v312
    %vm510 = vcmp.lt.f32.partialorder %v509, 0.0004427343
    %v511 = vsel %vm510, %v508, %v505
    %v512 = vadd.f32 %v314, 1.0
    %v513 = vlog2.pop %v512
    %v514 = vmul.f32 %v513, 0.6931472
    %v515 = vmul.f32 -0.5, %v314
    %v516 = vadd.f32 %v515, 1.0
    %v517 = vmul.f32 %v516, %v314
    %v518 = vand.u32 2147483647, %v314
    %vm519 = vcmp.lt.f32.partialorder %v518, 0.0004427343
    %v520 = vsel %vm519, %v517, %v514
    %v521 = vadd.f32 %v316, 1.0
    %v522 = vlog2.pop %v521
    %v523 = vmul.f32 %v522, 0.6931472
    %v524 = vmul.f32 -0.5, %v316
    %v525 = vadd.f32 %v524, 1.0
    %v526 = vmul.f32 %v525, %v316
    %v527 = vand.u32 2147483647, %v316
    %vm528 = vcmp.lt.f32.partialorder %v527, 0.0004427343
    %v529 = vsel %vm528, %v526, %v523
    %v530 = vadd.f32 %v318, 1.0
    %v531 = vlog2.pop %v530
    %v532 = vmul.f32 %v531, 0.6931472
    %v533 = vmul.f32 -0.5, %v318
    %v534 = vadd.f32 %v533, 1.0
    %v535 = vmul.f32 %v534, %v318
    %v536 = vand.u32 2147483647, %v318
    %vm537 = vcmp.lt.f32.partialorder %v536, 0.0004427343
    %v538 = vsel %vm537, %v535, %v532
    %v539 = vadd.f32 %v320, 1.0
    %v540 = vlog2.pop %v539
    %v541 = vmul.f32 %v540, 0.6931472
    %v542 = vmul.f32 -0.5, %v320
    %v543 = vadd.f32 %v542, 1.0
    %v544 = vmul.f32 %v543, %v320
    %v545 = vand.u32 2147483647, %v320
    %vm546 = vcmp.lt.f32.partialorder %v545, 0.0004427343
    %v547 = vsel %vm546, %v544, %v541
    %v548 = vadd.f32 %v322, 1.0
    %v549 = vlog2.pop %v548
    %v550 = vmul.f32 %v549, 0.6931472
    %v551 = vmul.f32 -0.5, %v322
    %v552 = vadd.f32 %v551, 1.0
    %v553 = vmul.f32 %v552, %v322
    %v554 = vand.u32 2147483647, %v322
    %vm555 = vcmp.lt.f32.partialorder %v554, 0.0004427343
    %v556 = vsel %vm555, %v553, %v550
    %v557 = vadd.f32 %v324, 1.0
    %v558 = vlog2.pop %v557
    %v559 = vmul.f32 %v558, 0.6931472
    %v560 = vmul.f32 -0.5, %v324
    %v561 = vadd.f32 %v560, 1.0
    %v562 = vmul.f32 %v561, %v324
    %v563 = vand.u32 2147483647, %v324
    %vm564 = vcmp.lt.f32.partialorder %v563, 0.0004427343
    %v565 = vsel %vm564, %v562, %v559
    %v566 = vadd.f32 %v326, 1.0
    %v567 = vlog2.pop %v566
    %v568 = vmul.f32 %v567, 0.6931472
    %v569 = vmul.f32 -0.5, %v326
    %v570 = vadd.f32 %v569, 1.0
    %v571 = vmul.f32 %v570, %v326
    %v572 = vand.u32 2147483647, %v326
    %vm573 = vcmp.lt.f32.partialorder %v572, 0.0004427343
    %v574 = vsel %vm573, %v571, %v568
    %v575 = vadd.f32 %v328, 1.0
    %v576 = vlog2.pop %v575
    %v577 = vmul.f32 %v576, 0.6931472
    %v578 = vmul.f32 -0.5, %v328
    %v579 = vadd.f32 %v578, 1.0
    %v580 = vmul.f32 %v579, %v328
    %v581 = vand.u32 2147483647, %v328
    %vm582 = vcmp.lt.f32.partialorder %v581, 0.0004427343
    %v583 = vsel %vm582, %v580, %v577
    %v584 = vadd.f32 %v330, 1.0
    %v585 = vlog2.pop %v584
    %v586 = vmul.f32 %v585, 0.6931472
    %v587 = vmul.f32 -0.5, %v330
    %v588 = vadd.f32 %v587, 1.0
    %v589 = vmul.f32 %v588, %v330
    %v590 = vand.u32 2147483647, %v330
    %vm591 = vcmp.lt.f32.partialorder %v590, 0.0004427343
    %v592 = vsel %vm591, %v589, %v586
    %v593 = vadd.f32 %v332, 1.0
    %v594 = vlog2.pop %v593
    %v595 = vmul.f32 %v594, 0.6931472
    %v596 = vmul.f32 -0.5, %v332
    %v597 = vadd.f32 %v596, 1.0
    %v598 = vmul.f32 %v597, %v332
    %v599 = vand.u32 2147483647, %v332
    %vm600 = vcmp.lt.f32.partialorder %v599, 0.0004427343
    %v601 = vsel %vm600, %v598, %v595
    %v602 = vadd.f32 %v334, 1.0
    %v603 = vlog2.pop %v602
    %v604 = vmul.f32 %v603, 0.6931472
    %v605 = vmul.f32 -0.5, %v334
    %v606 = vadd.f32 %v605, 1.0
    %v607 = vmul.f32 %v606, %v334
    %v608 = vand.u32 2147483647, %v334
    %vm609 = vcmp.lt.f32.partialorder %v608, 0.0004427343
    %v610 = vsel %vm609, %v607, %v604
    %v611 = vadd.f32 %v336, 1.0
    %v612 = vlog2.pop %v611
    %v613 = vmul.f32 %v612, 0.6931472
    %v614 = vmul.f32 -0.5, %v336
    %v615 = vadd.f32 %v614, 1.0
    %v616 = vmul.f32 %v615, %v336
    %v617 = vand.u32 2147483647, %v336
    %vm618 = vcmp.lt.f32.partialorder %v617, 0.0004427343
    %v619 = vsel %vm618, %v616, %v613
    %v620 = vadd.f32 %v338, 1.0
    %v621 = vlog2.pop %v620
    %v622 = vmul.f32 %v621, 0.6931472
    %v623 = vmul.f32 -0.5, %v338
    %v624 = vadd.f32 %v623, 1.0
    %v625 = vmul.f32 %v624, %v338
    %v626 = vand.u32 2147483647, %v338
    %vm627 = vcmp.lt.f32.partialorder %v626, 0.0004427343
    %v628 = vsel %vm627, %v625, %v622
    %v629 = vadd.f32 %v340, 1.0
    %v630 = vlog2.pop %v629
    %v631 = vmul.f32 %v630, 0.6931472
    %v632 = vmul.f32 -0.5, %v340
    %v633 = vadd.f32 %v632, 1.0
    %v634 = vmul.f32 %v633, %v340
    %v635 = vand.u32 2147483647, %v340
    %vm636 = vcmp.lt.f32.partialorder %v635, 0.0004427343
    %v637 = vsel %vm636, %v634, %v631
    %v638 = vadd.f32 %v342, 1.0
    %v639 = vlog2.pop %v638
    %v640 = vmul.f32 %v639, 0.6931472
    %v641 = vmul.f32 -0.5, %v342
    %v642 = vadd.f32 %v641, 1.0
    %v643 = vmul.f32 %v642, %v342
    %v644 = vand.u32 2147483647, %v342
    %vm645 = vcmp.lt.f32.partialorder %v644, 0.0004427343
    %v646 = vsel %vm645, %v643, %v640
    %v647 = vadd.f32 %v344, 1.0
    %v648 = vlog2.pop %v647
    %v649 = vmul.f32 %v648, 0.6931472
    %v650 = vmul.f32 -0.5, %v344
    %v651 = vadd.f32 %v650, 1.0
    %v652 = vmul.f32 %v651, %v344
    %v653 = vand.u32 2147483647, %v344
    %vm654 = vcmp.lt.f32.partialorder %v653, 0.0004427343
    %v655 = vsel %vm654, %v652, %v649
    %v656 = vadd.f32 %v346, 1.0
    %v657 = vlog2.pop %v656
    %v658 = vmul.f32 %v657, 0.6931472
    %v659 = vmul.f32 -0.5, %v346
    %v660 = vadd.f32 %v659, 1.0
    %v661 = vmul.f32 %v660, %v346
    %v662 = vand.u32 2147483647, %v346
    %vm663 = vcmp.lt.f32.partialorder %v662, 0.0004427343
    %v664 = vsel %vm663, %v661, %v658
    %v665 = vadd.f32 %v348, 1.0
    %v666 = vlog2.pop %v665
    %v667 = vmul.f32 %v666, 0.6931472
    %v668 = vmul.f32 -0.5, %v348
    %v669 = vadd.f32 %v668, 1.0
    %v670 = vmul.f32 %v669, %v348
    %v671 = vand.u32 2147483647, %v348
    %vm672 = vcmp.lt.f32.partialorder %v671, 0.0004427343
    %v673 = vsel %vm672, %v670, %v667
    %v674 = vadd.f32 %v350, 1.0
    %v675 = vlog2.pop %v674
    %v676 = vmul.f32 %v675, 0.6931472
    %v677 = vmul.f32 -0.5, %v350
    %v678 = vadd.f32 %v677, 1.0
    %v679 = vmul.f32 %v678, %v350
    %v680 = vand.u32 2147483647, %v350
    %vm681 = vcmp.lt.f32.partialorder %v680, 0.0004427343
    %v682 = vsel %vm681, %v679, %v676
    %v683 = vadd.f32 %v352, 1.0
    %v684 = vlog2.pop %v683
    %v685 = vmul.f32 %v684, 0.6931472
    %v686 = vmul.f32 -0.5, %v352
    %v687 = vadd.f32 %v686, 1.0
    %v688 = vmul.f32 %v687, %v352
    %v689 = vand.u32 2147483647, %v352
    %vm690 = vcmp.lt.f32.partialorder %v689, 0.0004427343
    %v691 = vsel %vm690, %v688, %v685
    %v692 = vadd.f32 %v354, 1.0
    %v693 = vlog2.pop %v692
    %v694 = vmul.f32 %v693, 0.6931472
    %v695 = vmul.f32 -0.5, %v354
    %v696 = vadd.f32 %v695, 1.0
    %v697 = vmul.f32 %v696, %v354
    %v698 = vand.u32 2147483647, %v354
    %vm699 = vcmp.lt.f32.partialorder %v698, 0.0004427343
    %v700 = vsel %vm699, %v697, %v694
    %v701 = vadd.f32 %v356, 1.0
    %v702 = vlog2.pop %v701
    %v703 = vmul.f32 %v702, 0.6931472
    %v704 = vmul.f32 -0.5, %v356
    %v705 = vadd.f32 %v704, 1.0
    %v706 = vmul.f32 %v705, %v356
    %v707 = vand.u32 2147483647, %v356
    %vm708 = vcmp.lt.f32.partialorder %v707, 0.0004427343
    %v709 = vsel %vm708, %v706, %v703
    %v710 = vadd.f32 %v358, 1.0
    %v711 = vlog2.pop %v710
    %v712 = vmul.f32 %v711, 0.6931472
    %v713 = vmul.f32 -0.5, %v358
    %v714 = vadd.f32 %v713, 1.0
    %v715 = vmul.f32 %v714, %v358
    %v716 = vand.u32 2147483647, %v358
    %vm717 = vcmp.lt.f32.partialorder %v716, 0.0004427343
    %v718 = vsel %vm717, %v715, %v712
    %v719 = vadd.f32 %v360, 1.0
    %v720 = vlog2.pop %v719
    %v721 = vmul.f32 %v720, 0.6931472
    %v722 = vmul.f32 -0.5, %v360
    %v723 = vadd.f32 %v722, 1.0
    %v724 = vmul.f32 %v723, %v360
    %v725 = vand.u32 2147483647, %v360
    %vm726 = vcmp.lt.f32.partialorder %v725, 0.0004427343
    %v727 = vsel %vm726, %v724, %v721
    %v728 = vadd.f32 %v362, 1.0
    %v729 = vlog2.pop %v728
    %v730 = vmul.f32 %v729, 0.6931472
    %v731 = vmul.f32 -0.5, %v362
    %v732 = vadd.f32 %v731, 1.0
    %v733 = vmul.f32 %v732, %v362
    %v734 = vand.u32 2147483647, %v362
    %vm735 = vcmp.lt.f32.partialorder %v734, 0.0004427343
    %v736 = vsel %vm735, %v733, %v730
    %v737 = vadd.f32 %v364, 1.0
    %v738 = vlog2.pop %v737
    %v739 = vmul.f32 %v738, 0.6931472
    %v740 = vmul.f32 -0.5, %v364
    %v741 = vadd.f32 %v740, 1.0
    %v742 = vmul.f32 %v741, %v364
    %v743 = vand.u32 2147483647, %v364
    %vm744 = vcmp.lt.f32.partialorder %v743, 0.0004427343
    %v745 = vsel %vm744, %v742, %v739
    %v746 = vadd.f32 %v366, 1.0
    %v747 = vlog2.pop %v746
    %v748 = vmul.f32 %v747, 0.6931472
    %v749 = vmul.f32 -0.5, %v366
    %v750 = vadd.f32 %v749, 1.0
    %v751 = vmul.f32 %v750, %v366
    %v752 = vand.u32 2147483647, %v366
    %vm753 = vcmp.lt.f32.partialorder %v752, 0.0004427343
    %v754 = vsel %vm753, %v751, %v748
    %v755 = vadd.f32 %v368, 1.0
    %v756 = vlog2.pop %v755
    %v757 = vmul.f32 %v756, 0.6931472
    %v758 = vmul.f32 -0.5, %v368
    %v759 = vadd.f32 %v758, 1.0
    %v760 = vmul.f32 %v759, %v368
    %v761 = vand.u32 2147483647, %v368
    %vm762 = vcmp.lt.f32.partialorder %v761, 0.0004427343
    %v763 = vsel %vm762, %v760, %v757
    %v764 = vadd.f32 %v370, 1.0
    %v765 = vlog2.pop %v764
    %v766 = vmul.f32 %v765, 0.6931472
    %v767 = vmul.f32 -0.5, %v370
    %v768 = vadd.f32 %v767, 1.0
    %v769 = vmul.f32 %v768, %v370
    %v770 = vand.u32 2147483647, %v370
    %vm771 = vcmp.lt.f32.partialorder %v770, 0.0004427343
    %v772 = vsel %vm771, %v769, %v766
    %v773 = vadd.f32 %v372, 1.0
    %v774 = vlog2.pop %v773
    %v775 = vmul.f32 %v774, 0.6931472
    %v776 = vmul.f32 -0.5, %v372
    %v777 = vadd.f32 %v776, 1.0
    %v778 = vmul.f32 %v777, %v372
    %v779 = vand.u32 2147483647, %v372
    %vm780 = vcmp.lt.f32.partialorder %v779, 0.0004427343
    %v781 = vsel %vm780, %v778, %v775
    %v782 = vadd.f32 %v374, 1.0
    %v783 = vlog2.pop %v782
    %v784 = vmul.f32 %v783, 0.6931472
    %v785 = vmul.f32 -0.5, %v374
    %v786 = vadd.f32 %v785, 1.0
    %v787 = vmul.f32 %v786, %v374
    %v788 = vand.u32 2147483647, %v374
    %vm789 = vcmp.lt.f32.partialorder %v788, 0.0004427343
    %v790 = vsel %vm789, %v787, %v784
    %v791 = vadd.f32 %v376, 1.0
    %v792 = vlog2.pop %v791
    %v793 = vmul.f32 %v792, 0.6931472
    %v794 = vmul.f32 -0.5, %v376
    %v795 = vadd.f32 %v794, 1.0
    %v796 = vmul.f32 %v795, %v376
    %v797 = vand.u32 2147483647, %v376
    %vm798 = vcmp.lt.f32.partialorder %v797, 0.0004427343
    %v799 = vsel %vm798, %v796, %v793
    %v800 = vadd.f32 %v378, 1.0
    %v801 = vlog2.pop %v800
    %v802 = vmul.f32 %v801, 0.6931472
    %v803 = vmul.f32 -0.5, %v378
    %v804 = vadd.f32 %v803, 1.0
    %v805 = vmul.f32 %v804, %v378
    %v806 = vand.u32 2147483647, %v378
    %vm807 = vcmp.lt.f32.partialorder %v806, 0.0004427343
    %v808 = vsel %vm807, %v805, %v802
    %v809 = vadd.f32 %v380, 1.0
    %v810 = vlog2.pop %v809
    %v811 = vmul.f32 %v810, 0.6931472
    %v812 = vmul.f32 -0.5, %v380
    %v813 = vadd.f32 %v812, 1.0
    %v814 = vmul.f32 %v813, %v380
    %v815 = vand.u32 2147483647, %v380
    %vm816 = vcmp.lt.f32.partialorder %v815, 0.0004427343
    %v817 = vsel %vm816, %v814, %v811
    %v818 = vadd.f32 %v382, 1.0
    %v819 = vlog2.pop %v818
    %v820 = vmul.f32 %v819, 0.6931472
    %v821 = vmul.f32 -0.5, %v382
    %v822 = vadd.f32 %v821, 1.0
    %v823 = vmul.f32 %v822, %v382
    %v824 = vand.u32 2147483647, %v382
    %vm825 = vcmp.lt.f32.partialorder %v824, 0.0004427343
    %v826 = vsel %vm825, %v823, %v820
    %v827 = vadd.f32 %v384, 1.0
    %v828 = vlog2.pop %v827
    %v829 = vmul.f32 %v828, 0.6931472
    %v830 = vmul.f32 -0.5, %v384
    %v831 = vadd.f32 %v830, 1.0
    %v832 = vmul.f32 %v831, %v384
    %v833 = vand.u32 2147483647, %v384
    %vm834 = vcmp.lt.f32.partialorder %v833, 0.0004427343
    %v835 = vsel %vm834, %v832, %v829
    %v836 = vadd.f32 %v386, 1.0
    %v837 = vlog2.pop %v836
    %v838 = vmul.f32 %v837, 0.6931472
    %v839 = vmul.f32 -0.5, %v386
    %v840 = vadd.f32 %v839, 1.0
    %v841 = vmul.f32 %v840, %v386
    %v842 = vand.u32 2147483647, %v386
    %vm843 = vcmp.lt.f32.partialorder %v842, 0.0004427343
    %v844 = vsel %vm843, %v841, %v838
    %v845 = vadd.f32 %v388, 1.0
    %v846 = vlog2.pop %v845
    %v847 = vmul.f32 %v846, 0.6931472
    %v848 = vmul.f32 -0.5, %v388
    %v849 = vadd.f32 %v848, 1.0
    %v850 = vmul.f32 %v849, %v388
    %v851 = vand.u32 2147483647, %v388
    %vm852 = vcmp.lt.f32.partialorder %v851, 0.0004427343
    %v853 = vsel %vm852, %v850, %v847
    %v854 = vadd.f32 %v390, 1.0
    %v855 = vlog2.pop %v854
    %v856 = vmul.f32 %v855, 0.6931472
    %v857 = vmul.f32 -0.5, %v390
    %v858 = vadd.f32 %v857, 1.0
    %v859 = vmul.f32 %v858, %v390
    %v860 = vand.u32 2147483647, %v390
    %vm861 = vcmp.lt.f32.partialorder %v860, 0.0004427343
    %v862 = vsel %vm861, %v859, %v856
    %v863 = vadd.f32 %v392, 1.0
    %v864 = vlog2.pop %v863
    %v865 = vmul.f32 %v864, 0.6931472
    %v866 = vmul.f32 -0.5, %v392
    %v867 = vadd.f32 %v866, 1.0
    %v868 = vmul.f32 %v867, %v392
    %v869 = vand.u32 2147483647, %v392
    %vm870 = vcmp.lt.f32.partialorder %v869, 0.0004427343
    %v871 = vsel %vm870, %v868, %v865
    %v872 = vadd.f32 %v394, 1.0
    %v873 = vlog2.pop %v872
    %v874 = vmul.f32 %v873, 0.6931472
    %v875 = vmul.f32 -0.5, %v394
    %v876 = vadd.f32 %v875, 1.0
    %v877 = vmul.f32 %v876, %v394
    %v878 = vand.u32 2147483647, %v394
    %vm879 = vcmp.lt.f32.partialorder %v878, 0.0004427343
    %v880 = vsel %vm879, %v877, %v874
    %v881 = vadd.f32 %v396, 1.0
    %v882 = vlog2.pop %v881
    %v883 = vmul.f32 %v882, 0.6931472
    %v884 = vmul.f32 -0.5, %v396
    %v885 = vadd.f32 %v884, 1.0
    %v886 = vmul.f32 %v885, %v396
    %v887 = vand.u32 2147483647, %v396
    %vm888 = vcmp.lt.f32.partialorder %v887, 0.0004427343
    %v889 = vsel %vm888, %v886, %v883
    %v890 = vadd.f32 %v398, 1.0
    %v891 = vlog2.pop %v890
    %v892 = vmul.f32 %v891, 0.6931472
    %v893 = vmul.f32 -0.5, %v398
    %v894 = vadd.f32 %v893, 1.0
    %v895 = vmul.f32 %v894, %v398
    %v896 = vand.u32 2147483647, %v398
    %vm897 = vcmp.lt.f32.partialorder %v896, 0.0004427343
    %v898 = vsel %vm897, %v895, %v892
    %v899 = vadd.f32 %v400, 1.0
    %v900 = vlog2.pop %v899
    %v901 = vmul.f32 %v900, 0.6931472
    %v902 = vmul.f32 -0.5, %v400
    %v903 = vadd.f32 %v902, 1.0
    %v904 = vmul.f32 %v903, %v400
    %v905 = vand.u32 2147483647, %v400
    %vm906 = vcmp.lt.f32.partialorder %v905, 0.0004427343
    %v907 = vsel %vm906, %v904, %v901
    %v908 = vadd.f32 %v402, 1.0
    %v909 = vlog2.pop %v908
    %v910 = vmul.f32 %v909, 0.6931472
    %v911 = vmul.f32 -0.5, %v402
    %v912 = vadd.f32 %v911, 1.0
    %v913 = vmul.f32 %v912, %v402
    %v914 = vand.u32 2147483647, %v402
    %vm915 = vcmp.lt.f32.partialorder %v914, 0.0004427343
    %v916 = vsel %vm915, %v913, %v910
    %v917 = vadd.f32 %v404, 1.0
    %v918 = vlog2.pop %v917
    %v919 = vmul.f32 %v918, 0.6931472
    %v920 = vmul.f32 -0.5, %v404
    %v921 = vadd.f32 %v920, 1.0
    %v922 = vmul.f32 %v921, %v404
    %v923 = vand.u32 2147483647, %v404
    %vm924 = vcmp.lt.f32.partialorder %v923, 0.0004427343
    %v925 = vsel %vm924, %v922, %v919
    %v926 = vadd.f32 %v406, 1.0
    %v927 = vlog2.pop %v926
    %v928 = vmul.f32 %v927, 0.6931472
    %v929 = vmul.f32 -0.5, %v406
    %v930 = vadd.f32 %v929, 1.0
    %v931 = vmul.f32 %v930, %v406
    %v932 = vand.u32 2147483647, %v406
    %vm933 = vcmp.lt.f32.partialorder %v932, 0.0004427343
    %v934 = vsel %vm933, %v931, %v928
    %v935 = vadd.f32 %v408, 1.0
    %v936 = vlog2.pop %v935
    %v937 = vmul.f32 %v936, 0.6931472
    %v938 = vmul.f32 -0.5, %v408
    %v939 = vadd.f32 %v938, 1.0
    %v940 = vmul.f32 %v939, %v408
    %v941 = vand.u32 2147483647, %v408
    %vm942 = vcmp.lt.f32.partialorder %v941, 0.0004427343
    %v943 = vsel %vm942, %v940, %v937
    %v944 = vadd.f32 %v410, 1.0
    %v945 = vlog2.pop %v944
    %v946 = vmul.f32 %v945, 0.6931472
    %v947 = vmul.f32 -0.5, %v410
    %v948 = vadd.f32 %v947, 1.0
    %v949 = vmul.f32 %v948, %v410
    %v950 = vand.u32 2147483647, %v410
    %vm951 = vcmp.lt.f32.partialorder %v950, 0.0004427343
    %v952 = vsel %vm951, %v949, %v946
    %v953 = vadd.f32 %v412, 1.0
    %v954 = vlog2.pop %v953
    %v955 = vmul.f32 %v954, 0.6931472
    %v956 = vmul.f32 -0.5, %v412
    %v957 = vadd.f32 %v956, 1.0
    %v958 = vmul.f32 %v957, %v412
    %v959 = vand.u32 2147483647, %v412
    %vm960 = vcmp.lt.f32.partialorder %v959, 0.0004427343
    %v961 = vsel %vm960, %v958, %v955
    %v962 = vadd.f32 %v414, 1.0
    %v963 = vlog2.pop %v962
    %v964 = vmul.f32 %v963, 0.6931472
    %v965 = vmul.f32 -0.5, %v414
    %v966 = vadd.f32 %v965, 1.0
    %v967 = vmul.f32 %v966, %v414
    %v968 = vand.u32 2147483647, %v414
    %vm969 = vcmp.lt.f32.partialorder %v968, 0.0004427343
    %v970 = vsel %vm969, %v967, %v964
    %v971 = vadd.f32 %v416, 1.0
    %v972 = vlog2.pop %v971
    %v973 = vmul.f32 %v972, 0.6931472
    %v974 = vmul.f32 -0.5, %v416
    %v975 = vadd.f32 %v974, 1.0
    %v976 = vmul.f32 %v975, %v416
    %v977 = vand.u32 2147483647, %v416
    %vm978 = vcmp.lt.f32.partialorder %v977, 0.0004427343
    %v979 = vsel %vm978, %v976, %v973
    %v980 = vadd.f32 %v418, 1.0
    %v981 = vlog2.pop %v980
    %v982 = vmul.f32 %v981, 0.6931472
    %v983 = vmul.f32 -0.5, %v418
    %v984 = vadd.f32 %v983, 1.0
    %v985 = vmul.f32 %v984, %v418
    %v986 = vand.u32 2147483647, %v418
    %vm987 = vcmp.lt.f32.partialorder %v986, 0.0004427343
    %v988 = vsel %vm987, %v985, %v982
    %v989 = vadd.f32 %v420, 1.0
    %v990 = vlog2.pop %v989
    %v991 = vmul.f32 %v990, 0.6931472
    %v992 = vmul.f32 -0.5, %v420
    %v993 = vadd.f32 %v992, 1.0
    %v994 = vmul.f32 %v993, %v420
    %v995 = vand.u32 2147483647, %v420
    %vm996 = vcmp.lt.f32.partialorder %v995, 0.0004427343
    %v997 = vsel %vm996, %v994, %v991
    %v998 = vadd.f32 %v422, 1.0
    %v999 = vlog2.pop %v998
    %v1000 = vmul.f32 %v999, 0.6931472
    %v1001 = vmul.f32 -0.5, %v422
    %v1002 = vadd.f32 %v1001, 1.0
    %v1003 = vmul.f32 %v1002, %v422
    %v1004 = vand.u32 2147483647, %v422
    %vm1005 = vcmp.lt.f32.partialorder %v1004, 0.0004427343
    %v1006 = vsel %vm1005, %v1003, %v1000
    %v1007 = vadd.f32 %v424, 1.0
    %v1008 = vlog2.pop %v1007
    %v1009 = vmul.f32 %v1008, 0.6931472
    %v1010 = vmul.f32 -0.5, %v424
    %v1011 = vadd.f32 %v1010, 1.0
    %v1012 = vmul.f32 %v1011, %v424
    %v1013 = vand.u32 2147483647, %v424
    %vm1014 = vcmp.lt.f32.partialorder %v1013, 0.0004427343
    %v1015 = vsel %vm1014, %v1012, %v1009
    %v1016 = vadd.f32 %v426, 1.0
    %v1017 = vlog2.pop %v1016
    %v1018 = vmul.f32 %v1017, 0.6931472
    %v1019 = vmul.f32 -0.5, %v426
    %v1020 = vadd.f32 %v1019, 1.0
    %v1021 = vmul.f32 %v1020, %v426
    %v1022 = vand.u32 2147483647, %v426
    %vm1023 = vcmp.lt.f32.partialorder %v1022, 0.0004427343
    %v1024 = vsel %vm1023, %v1021, %v1018
    %v1025 = vadd.f32 %v428, 1.0
    %v1026 = vlog2.pop %v1025
    %v1027 = vmul.f32 %v1026, 0.6931472
    %v1028 = vmul.f32 -0.5, %v428
    %v1029 = vadd.f32 %v1028, 1.0
    %v1030 = vmul.f32 %v1029, %v428
    %v1031 = vand.u32 2147483647, %v428
    %vm1032 = vcmp.lt.f32.partialorder %v1031, 0.0004427343
    %v1033 = vsel %vm1032, %v1030, %v1027
    %v1034 = vadd.f32 %v430, 1.0
    %v1035 = vlog2.pop %v1034
    %v1036 = vmul.f32 %v1035, 0.6931472
    %v1037 = vmul.f32 -0.5, %v430
    %v1038 = vadd.f32 %v1037, 1.0
    %v1039 = vmul.f32 %v1038, %v430
    %v1040 = vand.u32 2147483647, %v430
    %vm1041 = vcmp.lt.f32.partialorder %v1040, 0.0004427343
    %v1042 = vsel %vm1041, %v1039, %v1036
    %v1043 = vadd.f32 %v432, 1.0
    %v1044 = vlog2.pop %v1043
    %v1045 = vmul.f32 %v1044, 0.6931472
    %v1046 = vmul.f32 -0.5, %v432
    %v1047 = vadd.f32 %v1046, 1.0
    %v1048 = vmul.f32 %v1047, %v432
    %v1049 = vand.u32 2147483647, %v432
    %vm1050 = vcmp.lt.f32.partialorder %v1049, 0.0004427343
    %v1051 = vsel %vm1050, %v1048, %v1045
    %v1052 = vadd.f32 %v434, 1.0
    %v1053 = vlog2.pop %v1052
    %v1054 = vmul.f32 %v1053, 0.6931472
    %v1055 = vmul.f32 -0.5, %v434
    %v1056 = vadd.f32 %v1055, 1.0
    %v1057 = vmul.f32 %v1056, %v434
    %v1058 = vand.u32 2147483647, %v434
    %vm1059 = vcmp.lt.f32.partialorder %v1058, 0.0004427343
    %v1060 = vsel %vm1059, %v1057, %v1054
    %v1061 = vadd.f32 %v436, 1.0
    %v1062 = vlog2.pop %v1061
    %v1063 = vmul.f32 %v1062, 0.6931472
    %v1064 = vmul.f32 -0.5, %v436
    %v1065 = vadd.f32 %v1064, 1.0
    %v1066 = vmul.f32 %v1065, %v436
    %v1067 = vand.u32 2147483647, %v436
    %vm1068 = vcmp.lt.f32.partialorder %v1067, 0.0004427343
    %v1069 = vsel %vm1068, %v1066, %v1063
    %v1070 = vadd.f32 %v438, 1.0
    %v1071 = vlog2.pop %v1070
    %v1072 = vmul.f32 %v1071, 0.6931472
    %v1073 = vmul.f32 -0.5, %v438
    %v1074 = vadd.f32 %v1073, 1.0
    %v1075 = vmul.f32 %v1074, %v438
    %v1076 = vand.u32 2147483647, %v438
    %vm1077 = vcmp.lt.f32.partialorder %v1076, 0.0004427343
    %v1078 = vsel %vm1077, %v1075, %v1072
    %v1079 = vadd.f32 %v440, 1.0
    %v1080 = vlog2.pop %v1079
    %v1081 = vmul.f32 %v1080, 0.6931472
    %v1082 = vmul.f32 -0.5, %v440
    %v1083 = vadd.f32 %v1082, 1.0
    %v1084 = vmul.f32 %v1083, %v440
    %v1085 = vand.u32 2147483647, %v440
    %vm1086 = vcmp.lt.f32.partialorder %v1085, 0.0004427343
    %v1087 = vsel %vm1086, %v1084, %v1081
    %v1088 = vadd.f32 %v442, 1.0
    %v1089 = vlog2.pop %v1088
    %v1090 = vmul.f32 %v1089, 0.6931472
    %v1091 = vmul.f32 -0.5, %v442
    %v1092 = vadd.f32 %v1091, 1.0
    %v1093 = vmul.f32 %v1092, %v442
    %v1094 = vand.u32 2147483647, %v442
    %vm1095 = vcmp.lt.f32.partialorder %v1094, 0.0004427343
    %v1096 = vsel %vm1095, %v1093, %v1090
    %v1097 = vadd.f32 %v444, 1.0
    %v1098 = vlog2.pop %v1097
    %v1099 = vmul.f32 %v1098, 0.6931472
    %v1100 = vmul.f32 -0.5, %v444
    %v1101 = vadd.f32 %v1100, 1.0
    %v1102 = vmul.f32 %v1101, %v444
    %v1103 = vand.u32 2147483647, %v444
    %vm1104 = vcmp.lt.f32.partialorder %v1103, 0.0004427343
    %v1105 = vsel %vm1104, %v1102, %v1099
    %v1106 = vadd.f32 %v446, 1.0
    %v1107 = vlog2.pop %v1106
    %v1108 = vmul.f32 %v1107, 0.6931472
    %v1109 = vmul.f32 -0.5, %v446
    %v1110 = vadd.f32 %v1109, 1.0
    %v1111 = vmul.f32 %v1110, %v446
    %v1112 = vand.u32 2147483647, %v446
    %vm1113 = vcmp.lt.f32.partialorder %v1112, 0.0004427343
    %v1114 = vsel %vm1113, %v1111, %v1108
    %v1115 = vadd.f32 %v448, 1.0
    %v1116 = vlog2.pop %v1115
    %v1117 = vmul.f32 %v1116, 0.6931472
    %v1118 = vmul.f32 -0.5, %v448
    %v1119 = vadd.f32 %v1118, 1.0
    %v1120 = vmul.f32 %v1119, %v448
    %v1121 = vand.u32 2147483647, %v448
    %vm1122 = vcmp.lt.f32.partialorder %v1121, 0.0004427343
    %v1123 = vsel %vm1122, %v1120, %v1117
    %v1124 = vadd.f32 %v450, 1.0
    %v1125 = vlog2.pop %v1124
    %v1126 = vmul.f32 %v1125, 0.6931472
    %v1127 = vmul.f32 -0.5, %v450
    %v1128 = vadd.f32 %v1127, 1.0
    %v1129 = vmul.f32 %v1128, %v450
    %v1130 = vand.u32 2147483647, %v450
    %vm1131 = vcmp.lt.f32.partialorder %v1130, 0.0004427343
    %v1132 = vsel %vm1131, %v1129, %v1126
    %v1133 = vadd.f32 %v452, 1.0
    %v1134 = vlog2.pop %v1133
    %v1135 = vmul.f32 %v1134, 0.6931472
    %v1136 = vmul.f32 -0.5, %v452
    %v1137 = vadd.f32 %v1136, 1.0
    %v1138 = vmul.f32 %v1137, %v452
    %v1139 = vand.u32 2147483647, %v452
    %vm1140 = vcmp.lt.f32.partialorder %v1139, 0.0004427343
    %v1141 = vsel %vm1140, %v1138, %v1135
    %v1142 = vadd.f32 %v454, 1.0
    %v1143 = vlog2.pop %v1142
    %v1144 = vmul.f32 %v1143, 0.6931472
    %v1145 = vmul.f32 -0.5, %v454
    %v1146 = vadd.f32 %v1145, 1.0
    %v1147 = vmul.f32 %v1146, %v454
    %v1148 = vand.u32 2147483647, %v454
    %vm1149 = vcmp.lt.f32.partialorder %v1148, 0.0004427343
    %v1150 = vsel %vm1149, %v1147, %v1144
    %v1151 = vadd.f32 %v456, 1.0
    %v1152 = vlog2.pop %v1151
    %v1153 = vmul.f32 %v1152, 0.6931472
    %v1154 = vmul.f32 -0.5, %v456
    %v1155 = vadd.f32 %v1154, 1.0
    %v1156 = vmul.f32 %v1155, %v456
    %v1157 = vand.u32 2147483647, %v456
    %vm1158 = vcmp.lt.f32.partialorder %v1157, 0.0004427343
    %v1159 = vsel %vm1158, %v1156, %v1153
    %v1160 = vadd.f32 %v458, 1.0
    %v1161 = vlog2.pop %v1160
    %v1162 = vmul.f32 %v1161, 0.6931472
    %v1163 = vmul.f32 -0.5, %v458
    %v1164 = vadd.f32 %v1163, 1.0
    %v1165 = vmul.f32 %v1164, %v458
    %v1166 = vand.u32 2147483647, %v458
    %vm1167 = vcmp.lt.f32.partialorder %v1166, 0.0004427343
    %v1168 = vsel %vm1167, %v1165, %v1162
    %v1169 = vadd.f32 %v460, 1.0
    %v1170 = vlog2.pop %v1169
    %v1171 = vmul.f32 %v1170, 0.6931472
    %v1172 = vmul.f32 -0.5, %v460
    %v1173 = vadd.f32 %v1172, 1.0
    %v1174 = vmul.f32 %v1173, %v460
    %v1175 = vand.u32 2147483647, %v460
    %vm1176 = vcmp.lt.f32.partialorder %v1175, 0.0004427343
    %v1177 = vsel %vm1176, %v1174, %v1171
    %v1178 = vadd.f32 %v462, 1.0
    %v1179 = vlog2.pop %v1178
    %v1180 = vmul.f32 %v1179, 0.6931472
    %v1181 = vmul.f32 -0.5, %v462
    %v1182 = vadd.f32 %v1181, 1.0
    %v1183 = vmul.f32 %v1182, %v462
    %v1184 = vand.u32 2147483647, %v462
    %vm1185 = vcmp.lt.f32.partialorder %v1184, 0.0004427343
    %v1186 = vsel %vm1185, %v1183, %v1180
    %v1187 = vadd.f32 %v464, 1.0
    %v1188 = vlog2.pop %v1187
    %v1189 = vmul.f32 %v1188, 0.6931472
    %v1190 = vmul.f32 -0.5, %v464
    %v1191 = vadd.f32 %v1190, 1.0
    %v1192 = vmul.f32 %v1191, %v464
    %v1193 = vand.u32 2147483647, %v464
    %vm1194 = vcmp.lt.f32.partialorder %v1193, 0.0004427343
    %v1195 = vsel %vm1194, %v1192, %v1189
    %v1196 = vadd.f32 %v466, 1.0
    %v1197 = vlog2.pop %v1196
    %v1198 = vmul.f32 %v1197, 0.6931472
    %v1199 = vmul.f32 -0.5, %v466
    %v1200 = vadd.f32 %v1199, 1.0
    %v1201 = vmul.f32 %v1200, %v466
    %v1202 = vand.u32 2147483647, %v466
    %vm1203 = vcmp.lt.f32.partialorder %v1202, 0.0004427343
    %v1204 = vsel %vm1203, %v1201, %v1198
    %v1205 = vadd.f32 %v468, 1.0
    %v1206 = vlog2.pop %v1205
    %v1207 = vmul.f32 %v1206, 0.6931472
    %v1208 = vmul.f32 -0.5, %v468
    %v1209 = vadd.f32 %v1208, 1.0
    %v1210 = vmul.f32 %v1209, %v468
    %v1211 = vand.u32 2147483647, %v468
    %vm1212 = vcmp.lt.f32.partialorder %v1211, 0.0004427343
    %v1213 = vsel %vm1212, %v1210, %v1207
    %v1214 = vadd.f32 %v470, 1.0
    %v1215 = vlog2.pop %v1214
    %v1216 = vmul.f32 %v1215, 0.6931472
    %v1217 = vmul.f32 -0.5, %v470
    %v1218 = vadd.f32 %v1217, 1.0
    %v1219 = vmul.f32 %v1218, %v470
    %v1220 = vand.u32 2147483647, %v470
    %vm1221 = vcmp.lt.f32.partialorder %v1220, 0.0004427343
    %v1222 = vsel %vm1221, %v1219, %v1216
    %v1223 = vadd.f32 %v472, 1.0
    %v1224 = vlog2.pop %v1223
    %v1225 = vmul.f32 %v1224, 0.6931472
    %v1226 = vmul.f32 -0.5, %v472
    %v1227 = vadd.f32 %v1226, 1.0
    %v1228 = vmul.f32 %v1227, %v472
    %v1229 = vand.u32 2147483647, %v472
    %vm1230 = vcmp.lt.f32.partialorder %v1229, 0.0004427343
    %v1231 = vsel %vm1230, %v1228, %v1225
    %v1232 = vadd.f32 %v474, 1.0
    %v1233 = vlog2.pop %v1232
    %v1234 = vmul.f32 %v1233, 0.6931472
    %v1235 = vmul.f32 -0.5, %v474
    %v1236 = vadd.f32 %v1235, 1.0
    %v1237 = vmul.f32 %v1236, %v474
    %v1238 = vand.u32 2147483647, %v474
    %vm1239 = vcmp.lt.f32.partialorder %v1238, 0.0004427343
    %v1240 = vsel %vm1239, %v1237, %v1234
    %v1241 = vadd.f32 %v476, 1.0
    %v1242 = vlog2.pop %v1241
    %v1243 = vmul.f32 %v1242, 0.6931472
    %v1244 = vmul.f32 -0.5, %v476
    %v1245 = vadd.f32 %v1244, 1.0
    %v1246 = vmul.f32 %v1245, %v476
    %v1247 = vand.u32 2147483647, %v476
    %vm1248 = vcmp.lt.f32.partialorder %v1247, 0.0004427343
    %v1249 = vsel %vm1248, %v1246, %v1243
    %v1250 = vadd.f32 %v478, 1.0
    %v1251 = vlog2.pop %v1250
    %v1252 = vmul.f32 %v1251, 0.6931472
    %v1253 = vmul.f32 -0.5, %v478
    %v1254 = vadd.f32 %v1253, 1.0
    %v1255 = vmul.f32 %v1254, %v478
    %v1256 = vand.u32 2147483647, %v478
    %vm1257 = vcmp.lt.f32.partialorder %v1256, 0.0004427343
    %v1258 = vsel %vm1257, %v1255, %v1252
    %v1259 = vadd.f32 %v480, 1.0
    %v1260 = vlog2.pop %v1259
    %v1261 = vmul.f32 %v1260, 0.6931472
    %v1262 = vmul.f32 -0.5, %v480
    %v1263 = vadd.f32 %v1262, 1.0
    %v1264 = vmul.f32 %v1263, %v480
    %v1265 = vand.u32 2147483647, %v480
    %vm1266 = vcmp.lt.f32.partialorder %v1265, 0.0004427343
    %v1267 = vsel %vm1266, %v1264, %v1261
    %v1268 = vadd.f32 %v482, 1.0
    %v1269 = vlog2.pop %v1268
    %v1270 = vmul.f32 %v1269, 0.6931472
    %v1271 = vmul.f32 -0.5, %v482
    %v1272 = vadd.f32 %v1271, 1.0
    %v1273 = vmul.f32 %v1272, %v482
    %v1274 = vand.u32 2147483647, %v482
    %vm1275 = vcmp.lt.f32.partialorder %v1274, 0.0004427343
    %v1276 = vsel %vm1275, %v1273, %v1270
    %v1277 = vadd.f32 %v484, 1.0
    %v1278 = vlog2.pop %v1277
    %v1279 = vmul.f32 %v1278, 0.6931472
    %v1280 = vmul.f32 -0.5, %v484
    %v1281 = vadd.f32 %v1280, 1.0
    %v1282 = vmul.f32 %v1281, %v484
    %v1283 = vand.u32 2147483647, %v484
    %vm1284 = vcmp.lt.f32.partialorder %v1283, 0.0004427343
    %v1285 = vsel %vm1284, %v1282, %v1279
    %v1286 = vadd.f32 %v486, 1.0
    %v1287 = vlog2.pop %v1286
    %v1288 = vmul.f32 %v1287, 0.6931472
    %v1289 = vmul.f32 -0.5, %v486
    %v1290 = vadd.f32 %v1289, 1.0
    %v1291 = vmul.f32 %v1290, %v486
    %v1292 = vand.u32 2147483647, %v486
    %vm1293 = vcmp.lt.f32.partialorder %v1292, 0.0004427343
    %v1294 = vsel %vm1293, %v1291, %v1288
    %v1295 = vadd.f32 %v488, 1.0
    %v1296 = vlog2.pop %v1295
    %v1297 = vmul.f32 %v1296, 0.6931472
    %v1298 = vmul.f32 -0.5, %v488
    %v1299 = vadd.f32 %v1298, 1.0
    %v1300 = vmul.f32 %v1299, %v488
    %v1301 = vand.u32 2147483647, %v488
    %vm1302 = vcmp.lt.f32.partialorder %v1301, 0.0004427343
    %v1303 = vsel %vm1302, %v1300, %v1297
    %v1304 = vadd.f32 %v490, 1.0
    %v1305 = vlog2.pop %v1304
    %v1306 = vmul.f32 %v1305, 0.6931472
    %v1307 = vmul.f32 -0.5, %v490
    %v1308 = vadd.f32 %v1307, 1.0
    %v1309 = vmul.f32 %v1308, %v490
    %v1310 = vand.u32 2147483647, %v490
    %vm1311 = vcmp.lt.f32.partialorder %v1310, 0.0004427343
    %v1312 = vsel %vm1311, %v1309, %v1306
    %v1313 = vadd.f32 %v492, 1.0
    %v1314 = vlog2.pop %v1313
    %v1315 = vmul.f32 %v1314, 0.6931472
    %v1316 = vmul.f32 -0.5, %v492
    %v1317 = vadd.f32 %v1316, 1.0
    %v1318 = vmul.f32 %v1317, %v492
    %v1319 = vand.u32 2147483647, %v492
    %vm1320 = vcmp.lt.f32.partialorder %v1319, 0.0004427343
    %v1321 = vsel %vm1320, %v1318, %v1315
    %v1322 = vadd.f32 %v494, 1.0
    %v1323 = vlog2.pop %v1322
    %v1324 = vmul.f32 %v1323, 0.6931472
    %v1325 = vmul.f32 -0.5, %v494
    %v1326 = vadd.f32 %v1325, 1.0
    %v1327 = vmul.f32 %v1326, %v494
    %v1328 = vand.u32 2147483647, %v494
    %vm1329 = vcmp.lt.f32.partialorder %v1328, 0.0004427343
    %v1330 = vsel %vm1329, %v1327, %v1324
    %v1331 = vadd.f32 %v496, 1.0
    %v1332 = vlog2.pop %v1331
    %v1333 = vmul.f32 %v1332, 0.6931472
    %v1334 = vmul.f32 -0.5, %v496
    %v1335 = vadd.f32 %v1334, 1.0
    %v1336 = vmul.f32 %v1335, %v496
    %v1337 = vand.u32 2147483647, %v496
    %vm1338 = vcmp.lt.f32.partialorder %v1337, 0.0004427343
    %v1339 = vsel %vm1338, %v1336, %v1333
    %v1340 = vadd.f32 %v498, 1.0
    %v1341 = vlog2.pop %v1340
    %v1342 = vmul.f32 %v1341, 0.6931472
    %v1343 = vmul.f32 -0.5, %v498
    %v1344 = vadd.f32 %v1343, 1.0
    %v1345 = vmul.f32 %v1344, %v498
    %v1346 = vand.u32 2147483647, %v498
    %vm1347 = vcmp.lt.f32.partialorder %v1346, 0.0004427343
    %v1348 = vsel %vm1347, %v1345, %v1342
    %v1349 = vadd.f32 %v500, 1.0
    %v1350 = vlog2.pop %v1349
    %v1351 = vmul.f32 %v1350, 0.6931472
    %v1352 = vmul.f32 -0.5, %v500
    %v1353 = vadd.f32 %v1352, 1.0
    %v1354 = vmul.f32 %v1353, %v500
    %v1355 = vand.u32 2147483647, %v500
    %vm1356 = vcmp.lt.f32.partialorder %v1355, 0.0004427343
    %v1357 = vsel %vm1356, %v1354, %v1351
    %v1358 = vadd.f32 %v502, 1.0
    %v1359 = vlog2.pop %v1358
    %v1360 = vmul.f32 %v1359, 0.6931472
    %v1361 = vmul.f32 -0.5, %v502
    %v1362 = vadd.f32 %v1361, 1.0
    %v1363 = vmul.f32 %v1362, %v502
    %v1364 = vand.u32 2147483647, %v502
    %vm1365 = vcmp.lt.f32.partialorder %v1364, 0.0004427343
    %v1366 = vsel %vm1365, %v1363, %v1360
    %vm1367 = vcmp.gt.f32.partialorder %v119, 20.0
    %vm1368 = vcmp.gt.f32.partialorder %v120, 20.0
    %vm1369 = vcmp.gt.f32.partialorder %v121, 20.0
    %vm1370 = vcmp.gt.f32.partialorder %v122, 20.0
    %vm1371 = vcmp.gt.f32.partialorder %v123, 20.0
    %vm1372 = vcmp.gt.f32.partialorder %v124, 20.0
    %vm1373 = vcmp.gt.f32.partialorder %v125, 20.0
    %vm1374 = vcmp.gt.f32.partialorder %v126, 20.0
    %vm1375 = vcmp.gt.f32.partialorder %v127, 20.0
    %vm1376 = vcmp.gt.f32.partialorder %v128, 20.0
    %vm1377 = vcmp.gt.f32.partialorder %v129, 20.0
    %vm1378 = vcmp.gt.f32.partialorder %v130, 20.0
    %vm1379 = vcmp.gt.f32.partialorder %v131, 20.0
    %vm1380 = vcmp.gt.f32.partialorder %v132, 20.0
    %vm1381 = vcmp.gt.f32.partialorder %v133, 20.0
    %vm1382 = vcmp.gt.f32.partialorder %v134, 20.0
    %vm1383 = vcmp.gt.f32.partialorder %v135, 20.0
    %vm1384 = vcmp.gt.f32.partialorder %v136, 20.0
    %vm1385 = vcmp.gt.f32.partialorder %v137, 20.0
    %vm1386 = vcmp.gt.f32.partialorder %v138, 20.0
    %vm1387 = vcmp.gt.f32.partialorder %v139, 20.0
    %vm1388 = vcmp.gt.f32.partialorder %v140, 20.0
    %vm1389 = vcmp.gt.f32.partialorder %v141, 20.0
    %vm1390 = vcmp.gt.f32.partialorder %v142, 20.0
    %vm1391 = vcmp.gt.f32.partialorder %v143, 20.0
    %vm1392 = vcmp.gt.f32.partialorder %v144, 20.0
    %vm1393 = vcmp.gt.f32.partialorder %v145, 20.0
    %vm1394 = vcmp.gt.f32.partialorder %v146, 20.0
    %vm1395 = vcmp.gt.f32.partialorder %v147, 20.0
    %vm1396 = vcmp.gt.f32.partialorder %v148, 20.0
    %vm1397 = vcmp.gt.f32.partialorder %v149, 20.0
    %vm1398 = vcmp.gt.f32.partialorder %v150, 20.0
    %vm1399 = vcmp.gt.f32.partialorder %v151, 20.0
    %vm1400 = vcmp.gt.f32.partialorder %v152, 20.0
    %vm1401 = vcmp.gt.f32.partialorder %v153, 20.0
    %vm1402 = vcmp.gt.f32.partialorder %v154, 20.0
    %vm1403 = vcmp.gt.f32.partialorder %v155, 20.0
    %vm1404 = vcmp.gt.f32.partialorder %v156, 20.0
    %vm1405 = vcmp.gt.f32.partialorder %v157, 20.0
    %vm1406 = vcmp.gt.f32.partialorder %v158, 20.0
    %vm1407 = vcmp.gt.f32.partialorder %v159, 20.0
    %vm1408 = vcmp.gt.f32.partialorder %v160, 20.0
    %vm1409 = vcmp.gt.f32.partialorder %v161, 20.0
    %vm1410 = vcmp.gt.f32.partialorder %v162, 20.0
    %vm1411 = vcmp.gt.f32.partialorder %v163, 20.0
    %vm1412 = vcmp.gt.f32.partialorder %v164, 20.0
    %vm1413 = vcmp.gt.f32.partialorder %v165, 20.0
    %vm1414 = vcmp.gt.f32.partialorder %v166, 20.0
    %vm1415 = vcmp.gt.f32.partialorder %v167, 20.0
    %vm1416 = vcmp.gt.f32.partialorder %v168, 20.0
    %vm1417 = vcmp.gt.f32.partialorder %v169, 20.0
    %vm1418 = vcmp.gt.f32.partialorder %v170, 20.0
    %vm1419 = vcmp.gt.f32.partialorder %v171, 20.0
    %vm1420 = vcmp.gt.f32.partialorder %v172, 20.0
    %vm1421 = vcmp.gt.f32.partialorder %v173, 20.0
    %vm1422 = vcmp.gt.f32.partialorder %v174, 20.0
    %vm1423 = vcmp.gt.f32.partialorder %v175, 20.0
    %vm1424 = vcmp.gt.f32.partialorder %v176, 20.0
    %vm1425 = vcmp.gt.f32.partialorder %v177, 20.0
    %vm1426 = vcmp.gt.f32.partialorder %v178, 20.0
    %vm1427 = vcmp.gt.f32.partialorder %v179, 20.0
    %vm1428 = vcmp.gt.f32.partialorder %v180, 20.0
    %vm1429 = vcmp.gt.f32.partialorder %v181, 20.0
    %vm1430 = vcmp.gt.f32.partialorder %v182, 20.0
    %vm1431 = vcmp.gt.f32.partialorder %v183, 20.0
    %vm1432 = vcmp.gt.f32.partialorder %v184, 20.0
    %vm1433 = vcmp.gt.f32.partialorder %v185, 20.0
    %vm1434 = vcmp.gt.f32.partialorder %v186, 20.0
    %vm1435 = vcmp.gt.f32.partialorder %v187, 20.0
    %vm1436 = vcmp.gt.f32.partialorder %v188, 20.0
    %vm1437 = vcmp.gt.f32.partialorder %v189, 20.0
    %vm1438 = vcmp.gt.f32.partialorder %v190, 20.0
    %vm1439 = vcmp.gt.f32.partialorder %v191, 20.0
    %vm1440 = vcmp.gt.f32.partialorder %v192, 20.0
    %vm1441 = vcmp.gt.f32.partialorder %v193, 20.0
    %vm1442 = vcmp.gt.f32.partialorder %v194, 20.0
    %vm1443 = vcmp.gt.f32.partialorder %v195, 20.0
    %vm1444 = vcmp.gt.f32.partialorder %v196, 20.0
    %vm1445 = vcmp.gt.f32.partialorder %v197, 20.0
    %vm1446 = vcmp.gt.f32.partialorder %v198, 20.0
    %vm1447 = vcmp.gt.f32.partialorder %v199, 20.0
    %vm1448 = vcmp.gt.f32.partialorder %v200, 20.0
    %vm1449 = vcmp.gt.f32.partialorder %v201, 20.0
    %vm1450 = vcmp.gt.f32.partialorder %v202, 20.0
    %vm1451 = vcmp.gt.f32.partialorder %v203, 20.0
    %vm1452 = vcmp.gt.f32.partialorder %v204, 20.0
    %vm1453 = vcmp.gt.f32.partialorder %v205, 20.0
    %vm1454 = vcmp.gt.f32.partialorder %v206, 20.0
    %vm1455 = vcmp.gt.f32.partialorder %v207, 20.0
    %vm1456 = vcmp.gt.f32.partialorder %v208, 20.0
    %vm1457 = vcmp.gt.f32.partialorder %v209, 20.0
    %vm1458 = vcmp.gt.f32.partialorder %v210, 20.0
    %vm1459 = vcmp.gt.f32.partialorder %v211, 20.0
    %vm1460 = vcmp.gt.f32.partialorder %v212, 20.0
    %vm1461 = vcmp.gt.f32.partialorder %v213, 20.0
    %vm1462 = vcmp.gt.f32.partialorder %v214, 20.0
    %v1463 = vsel %vm1367, %v119, %v511
    %v1464 = vsel %vm1368, %v120, %v520
    %v1465 = vsel %vm1369, %v121, %v529
    %v1466 = vsel %vm1370, %v122, %v538
    %v1467 = vsel %vm1371, %v123, %v547
    %v1468 = vsel %vm1372, %v124, %v556
    %v1469 = vsel %vm1373, %v125, %v565
    %v1470 = vsel %vm1374, %v126, %v574
    %v1471 = vsel %vm1375, %v127, %v583
    %v1472 = vsel %vm1376, %v128, %v592
    %v1473 = vsel %vm1377, %v129, %v601
    %v1474 = vsel %vm1378, %v130, %v610
    %v1475 = vsel %vm1379, %v131, %v619
    %v1476 = vsel %vm1380, %v132, %v628
    %v1477 = vsel %vm1381, %v133, %v637
    %v1478 = vsel %vm1382, %v134, %v646
    %v1479 = vsel %vm1383, %v135, %v655
    %v1480 = vsel %vm1384, %v136, %v664
    %v1481 = vsel %vm1385, %v137, %v673
    %v1482 = vsel %vm1386, %v138, %v682
    %v1483 = vsel %vm1387, %v139, %v691
    %v1484 = vsel %vm1388, %v140, %v700
    %v1485 = vsel %vm1389, %v141, %v709
    %v1486 = vsel %vm1390, %v142, %v718
    %v1487 = vsel %vm1391, %v143, %v727
    %v1488 = vsel %vm1392, %v144, %v736
    %v1489 = vsel %vm1393, %v145, %v745
    %v1490 = vsel %vm1394, %v146, %v754
    %v1491 = vsel %vm1395, %v147, %v763
    %v1492 = vsel %vm1396, %v148, %v772
    %v1493 = vsel %vm1397, %v149, %v781
    %v1494 = vsel %vm1398, %v150, %v790
    %v1495 = vsel %vm1399, %v151, %v799
    %v1496 = vsel %vm1400, %v152, %v808
    %v1497 = vsel %vm1401, %v153, %v817
    %v1498 = vsel %vm1402, %v154, %v826
    %v1499 = vsel %vm1403, %v155, %v835
    %v1500 = vsel %vm1404, %v156, %v844
    %v1501 = vsel %vm1405, %v157, %v853
    %v1502 = vsel %vm1406, %v158, %v862
    %v1503 = vsel %vm1407, %v159, %v871
    %v1504 = vsel %vm1408, %v160, %v880
    %v1505 = vsel %vm1409, %v161, %v889
    %v1506 = vsel %vm1410, %v162, %v898
    %v1507 = vsel %vm1411, %v163, %v907
    %v1508 = vsel %vm1412, %v164, %v916
    %v1509 = vsel %vm1413, %v165, %v925
    %v1510 = vsel %vm1414, %v166, %v934
    %v1511 = vsel %vm1415, %v167, %v943
    %v1512 = vsel %vm1416, %v168, %v952
    %v1513 = vsel %vm1417, %v169, %v961
    %v1514 = vsel %vm1418, %v170, %v970
    %v1515 = vsel %vm1419, %v171, %v979
    %v1516 = vsel %vm1420, %v172, %v988
    %v1517 = vsel %vm1421, %v173, %v997
    %v1518 = vsel %vm1422, %v174, %v1006
    %v1519 = vsel %vm1423, %v175, %v1015
    %v1520 = vsel %vm1424, %v176, %v1024
    %v1521 = vsel %vm1425, %v177, %v1033
    %v1522 = vsel %vm1426, %v178, %v1042
    %v1523 = vsel %vm1427, %v179, %v1051
    %v1524 = vsel %vm1428, %v180, %v1060
    %v1525 = vsel %vm1429, %v181, %v1069
    %v1526 = vsel %vm1430, %v182, %v1078
    %v1527 = vsel %vm1431, %v183, %v1087
    %v1528 = vsel %vm1432, %v184, %v1096
    %v1529 = vsel %vm1433, %v185, %v1105
    %v1530 = vsel %vm1434, %v186, %v1114
    %v1531 = vsel %vm1435, %v187, %v1123
    %v1532 = vsel %vm1436, %v188, %v1132
    %v1533 = vsel %vm1437, %v189, %v1141
    %v1534 = vsel %vm1438, %v190, %v1150
    %v1535 = vsel %vm1439, %v191, %v1159
    %v1536 = vsel %vm1440, %v192, %v1168
    %v1537 = vsel %vm1441, %v193, %v1177
    %v1538 = vsel %vm1442, %v194, %v1186
    %v1539 = vsel %vm1443, %v195, %v1195
    %v1540 = vsel %vm1444, %v196, %v1204
    %v1541 = vsel %vm1445, %v197, %v1213
    %v1542 = vsel %vm1446, %v198, %v1222
    %v1543 = vsel %vm1447, %v199, %v1231
    %v1544 = vsel %vm1448, %v200, %v1240
    %v1545 = vsel %vm1449, %v201, %v1249
    %v1546 = vsel %vm1450, %v202, %v1258
    %v1547 = vsel %vm1451, %v203, %v1267
    %v1548 = vsel %vm1452, %v204, %v1276
    %v1549 = vsel %vm1453, %v205, %v1285
    %v1550 = vsel %vm1454, %v206, %v1294
    %v1551 = vsel %vm1455, %v207, %v1303
    %v1552 = vsel %vm1456, %v208, %v1312
    %v1553 = vsel %vm1457, %v209, %v1321
    %v1554 = vsel %vm1458, %v210, %v1330
    %v1555 = vsel %vm1459, %v211, %v1339
    %v1556 = vsel %vm1460, %v212, %v1348
    %v1557 = vsel %vm1461, %v213, %v1357
    %v1558 = vsel %vm1462, %v214, %v1366
    %1559 = vst [vmem:[#allocation5] sm:$0xff] %v1463
    %1560 = vst [vmem:[#allocation5 + $0x8] sm:$0xff] %v1464
    %1561 = vst [vmem:[#allocation5 + $0x10] sm:$0xff] %v1465
    %1562 = vst [vmem:[#allocation5 + $0x18] sm:$0xff] %v1466
    %1563 = vst [vmem:[#allocation5 + $0x20] sm:$0xff] %v1467
    %1564 = vst [vmem:[#allocation5 + $0x28] sm:$0xff] %v1468
    %1565 = vst [vmem:[#allocation5 + $0x30] sm:$0xff] %v1469
    %1566 = vst [vmem:[#allocation5 + $0x38] sm:$0xff] %v1470
    %1567 = vst [vmem:[#allocation5 + $0x40] sm:$0xff] %v1471
    %1568 = vst [vmem:[#allocation5 + $0x48] sm:$0xff] %v1472
    %1569 = vst [vmem:[#allocation5 + $0x50] sm:$0xff] %v1473
    %1570 = vst [vmem:[#allocation5 + $0x58] sm:$0xff] %v1474
    %1571 = vst [vmem:[#allocation5 + $0x60] sm:$0xff] %v1475
    %1572 = vst [vmem:[#allocation5 + $0x68] sm:$0xff] %v1476
    %1573 = vst [vmem:[#allocation5 + $0x70] sm:$0xff] %v1477
    %1574 = vst [vmem:[#allocation5 + $0x78] sm:$0xff] %v1478
    %1575 = vst [vmem:[#allocation5 + $0x80] sm:$0xff] %v1479
    %1576 = vst [vmem:[#allocation5 + $0x88] sm:$0xff] %v1480
    %1577 = vst [vmem:[#allocation5 + $0x90] sm:$0xff] %v1481
    %1578 = vst [vmem:[#allocation5 + $0x98] sm:$0xff] %v1482
    %1579 = vst [vmem:[#allocation5 + $0xa0] sm:$0xff] %v1483
    %1580 = vst [vmem:[#allocation5 + $0xa8] sm:$0xff] %v1484
    %1581 = vst [vmem:[#allocation5 + $0xb0] sm:$0xff] %v1485
    %1582 = vst [vmem:[#allocation5 + $0xb8] sm:$0xff] %v1486
    %1583 = vst [vmem:[#allocation5 + $0xc0] sm:$0xff] %v1487
    %1584 = vst [vmem:[#allocation5 + $0xc8] sm:$0xff] %v1488
    %1585 = vst [vmem:[#allocation5 + $0xd0] sm:$0xff] %v1489
    %1586 = vst [vmem:[#allocation5 + $0xd8] sm:$0xff] %v1490
    %1587 = vst [vmem:[#allocation5 + $0xe0] sm:$0xff] %v1491
    %1588 = vst [vmem:[#allocation5 + $0xe8] sm:$0xff] %v1492
    %1589 = vst [vmem:[#allocation5 + $0xf0] sm:$0xff] %v1493
    %1590 = vst [vmem:[#allocation5 + $0xf8] sm:$0xff] %v1494
    %1591 = vst [vmem:[#allocation5 + $0x100] sm:$0xff] %v1495
    %1592 = vst [vmem:[#allocation5 + $0x108] sm:$0xff] %v1496
    %1593 = vst [vmem:[#allocation5 + $0x110] sm:$0xff] %v1497
    %1594 = vst [vmem:[#allocation5 + $0x118] sm:$0xff] %v1498
    %1595 = vst [vmem:[#allocation5 + $0x120] sm:$0xff] %v1499
    %1596 = vst [vmem:[#allocation5 + $0x128] sm:$0xff] %v1500
    %1597 = vst [vmem:[#allocation5 + $0x130] sm:$0xff] %v1501
    %1598 = vst [vmem:[#allocation5 + $0x138] sm:$0xff] %v1502
    %1599 = vst [vmem:[#allocation5 + $0x140] sm:$0xff] %v1503
    %1600 = vst [vmem:[#allocation5 + $0x148] sm:$0xff] %v1504
    %1601 = vst [vmem:[#allocation5 + $0x150] sm:$0xff] %v1505
    %1602 = vst [vmem:[#allocation5 + $0x158] sm:$0xff] %v1506
    %1603 = vst [vmem:[#allocation5 + $0x160] sm:$0xff] %v1507
    %1604 = vst [vmem:[#allocation5 + $0x168] sm:$0xff] %v1508
    %1605 = vst [vmem:[#allocation5 + $0x170] sm:$0xff] %v1509
    %1606 = vst [vmem:[#allocation5 + $0x178] sm:$0xff] %v1510
    %1607 = vst [vmem:[#allocation5 + $0x180] sm:$0xff] %v1511
    %1608 = vst [vmem:[#allocation5 + $0x188] sm:$0xff] %v1512
    %1609 = vst [vmem:[#allocation5 + $0x190] sm:$0xff] %v1513
    %1610 = vst [vmem:[#allocation5 + $0x198] sm:$0xff] %v1514
    %1611 = vst [vmem:[#allocation5 + $0x1a0] sm:$0xff] %v1515
    %1612 = vst [vmem:[#allocation5 + $0x1a8] sm:$0xff] %v1516
    %1613 = vst [vmem:[#allocation5 + $0x1b0] sm:$0xff] %v1517
    %1614 = vst [vmem:[#allocation5 + $0x1b8] sm:$0xff] %v1518
    %1615 = vst [vmem:[#allocation5 + $0x1c0] sm:$0xff] %v1519
    %1616 = vst [vmem:[#allocation5 + $0x1c8] sm:$0xff] %v1520
    %1617 = vst [vmem:[#allocation5 + $0x1d0] sm:$0xff] %v1521
    %1618 = vst [vmem:[#allocation5 + $0x1d8] sm:$0xff] %v1522
    %1619 = vst [vmem:[#allocation5 + $0x1e0] sm:$0xff] %v1523
    %1620 = vst [vmem:[#allocation5 + $0x1e8] sm:$0xff] %v1524
    %1621 = vst [vmem:[#allocation5 + $0x1f0] sm:$0xff] %v1525
    %1622 = vst [vmem:[#allocation5 + $0x1f8] sm:$0xff] %v1526
    %1623 = vst [vmem:[#allocation5 + $0x200] sm:$0xff] %v1527
    %1624 = vst [vmem:[#allocation5 + $0x208] sm:$0xff] %v1528
    %1625 = vst [vmem:[#allocation5 + $0x210] sm:$0xff] %v1529
    %1626 = vst [vmem:[#allocation5 + $0x218] sm:$0xff] %v1530
    %1627 = vst [vmem:[#allocation5 + $0x220] sm:$0xff] %v1531
    %1628 = vst [vmem:[#allocation5 + $0x228] sm:$0xff] %v1532
    %1629 = vst [vmem:[#allocation5 + $0x230] sm:$0xff] %v1533
    %1630 = vst [vmem:[#allocation5 + $0x238] sm:$0xff] %v1534
    %1631 = vst [vmem:[#allocation5 + $0x240] sm:$0xff] %v1535
    %1632 = vst [vmem:[#allocation5 + $0x248] sm:$0xff] %v1536
    %1633 = vst [vmem:[#allocation5 + $0x250] sm:$0xff] %v1537
    %1634 = vst [vmem:[#allocation5 + $0x258] sm:$0xff] %v1538
    %1635 = vst [vmem:[#allocation5 + $0x260] sm:$0xff] %v1539
    %1636 = vst [vmem:[#allocation5 + $0x268] sm:$0xff] %v1540
    %1637 = vst [vmem:[#allocation5 + $0x270] sm:$0xff] %v1541
    %1638 = vst [vmem:[#allocation5 + $0x278] sm:$0xff] %v1542
    %1639 = vst [vmem:[#allocation5 + $0x280] sm:$0xff] %v1543
    %1640 = vst [vmem:[#allocation5 + $0x288] sm:$0xff] %v1544
    %1641 = vst [vmem:[#allocation5 + $0x290] sm:$0xff] %v1545
    %1642 = vst [vmem:[#allocation5 + $0x298] sm:$0xff] %v1546
    %1643 = vst [vmem:[#allocation5 + $0x2a0] sm:$0xff] %v1547
    %1644 = vst [vmem:[#allocation5 + $0x2a8] sm:$0xff] %v1548
    %1645 = vst [vmem:[#allocation5 + $0x2b0] sm:$0xff] %v1549
    %1646 = vst [vmem:[#allocation5 + $0x2b8] sm:$0xff] %v1550
    %1647 = vst [vmem:[#allocation5 + $0x2c0] sm:$0xff] %v1551
    %1648 = vst [vmem:[#allocation5 + $0x2c8] sm:$0xff] %v1552
    %1649 = vst [vmem:[#allocation5 + $0x2d0] sm:$0xff] %v1553
    %1650 = vst [vmem:[#allocation5 + $0x2d8] sm:$0xff] %v1554
    %1651 = vst [vmem:[#allocation5 + $0x2e0] sm:$0xff] %v1555
    %1652 = vst [vmem:[#allocation5 + $0x2e8] sm:$0xff] %v1556
    %1653 = vst [vmem:[#allocation5 + $0x2f0] sm:$0xff] %v1557
    %1654 = vst [vmem:[#allocation5 + $0x2f8] sm:$0xff] %v1558
    // Predicated region
    $region10: #{tpu_custom_call.1} parent=1 // pred_check
      _
    $region11: #{tpu_custom_call.1} parent=1 // pred_check_branch
      %1656 = sbr.rel (0) target = $region13
    $region12: #{tpu_custom_call.1} parent=1 // pred_region
      %s1658 = ssub.s32 12288, 12288
      %1659 = vsyncadd [#allocation4], %s1658
      %s1660 = sshll.u32 [#allocation5], 4
      %s1661 = int_to_ptr.vmem [resolvable:$true] %s1660
      %1666 = dma.vmem_to_hbm [thread:$0]  %s1661, 12288, %s1, [#allocation4], 4096, 4096, 256
    $region13: #{tpu_custom_call.1} parent=1 // pred_fallthru
      _
    // Predicated region
    $region14: #{tpu_custom_call.1} parent=1 // pred_check
      _
    $region15: #{tpu_custom_call.1} parent=1 // pred_check_branch
      %1668 = sbr.rel (0) target = $region17
    $region16: #{tpu_custom_call.1} parent=1 // pred_region
      %1669 = dma.done [#allocation4], 12288
    $region17: #{tpu_custom_call.1} parent=1 // pred_fallthru
      _
    %1670 = vsyncpa [#allocation3], 1
    %1671 = vsyncpa [#allocation4], 1

</llo_original>
